<compile_context>
chip_gen: v7x
topology: tpu7x:2x2x1
jax: 0.10.0
libtpu: 0.0.40
codegen_flags: <defaults>
</compile_context>

<pallas_src>
import jax
import jax.numpy as jnp
from jax.experimental import pallas as pl
from jax.experimental.pallas import tpu as pltpu


def _round_up(x, m):
    return ((x + m - 1) // m) * m


# ---------------------------------------------------------------------------
# Fused LSTM recurrence: per step  gates = x @ W_ih^T + h @ W_hh^T + b.
# Processes tt time steps per grid invocation; h/c carried in f32 VMEM scratch.
# ---------------------------------------------------------------------------
def _lstm_kernel(x_ref, wih_ref, whh_ref, b_ref, hs_ref, h_sc, c_sc):
    @pl.when(pl.program_id(1) == 0)          # new batch chunk -> reset carry
    def _():
        h_sc[...] = jnp.zeros_like(h_sc)
        c_sc[...] = jnp.zeros_like(c_sc)

    Hp = h_sc.shape[-1]
    tt = x_ref.shape[0]
    wih = wih_ref[...]                       # (E,  4Hp) bf16, resident
    whh = whh_ref[...]                       # (Hp, 4Hp) bf16, resident
    bias = b_ref[...]                        # (1,  4Hp) f32

    def step(s, carry):
        x_s = x_ref[s]                       # (bb, E) bf16
        h = h_sc[...]                        # (bb, Hp) f32
        c = c_sc[...]
        gates = (jnp.dot(x_s, wih, preferred_element_type=jnp.float32)
                 + jnp.dot(h.astype(jnp.bfloat16), whh,
                           preferred_element_type=jnp.float32)
                 + bias)
        # PyTorch gate order: i, f, g, o  (each slice is 128-lane aligned).
        i_g = jax.nn.sigmoid(gates[:, 0 * Hp:1 * Hp])
        f_g = jax.nn.sigmoid(gates[:, 1 * Hp:2 * Hp])
        g_g = jnp.tanh(gates[:, 2 * Hp:3 * Hp])
        o_g = jax.nn.sigmoid(gates[:, 3 * Hp:4 * Hp])
        c_new = f_g * c + i_g * g_g
        h_new = o_g * jnp.tanh(c_new)
        c_sc[...] = c_new
        h_sc[...] = h_new
        hs_ref[s] = h_new.astype(hs_ref.dtype)
        return carry

    jax.lax.fori_loop(0, tt, step, 0, unroll=True)


def lstm_recurrence(x, w_ih, w_hh, b_gates, *, Hp, tt=16, bb=None):
    """x: (T, Bp, E) bf16 time-major -> hs (T, Bp, Hp) bf16."""
    T, Bp, E = x.shape
    G4 = 4 * Hp
    tt = max(1, min(tt, T))
    T_pad = _round_up(T, tt)
    if T_pad != T:
        x = jnp.pad(x, ((0, T_pad - T), (0, 0), (0, 0)))
    bb = Bp if bb is None else min(bb, Bp)
    assert Bp % bb == 0 and bb % 8 == 0

    hs = pl.pallas_call(
        _lstm_kernel,
        out_shape=jax.ShapeDtypeStruct((T_pad, Bp, Hp), jnp.bfloat16),
        grid_spec=pltpu.PrefetchScalarGridSpec(
            num_scalar_prefetch=0,
            grid=(Bp // bb, T_pad // tt),            # batch chunks x time blocks
            in_specs=[
                pl.BlockSpec((tt, bb, E), lambda b, i: (i, b, 0)),  # x block
                pl.BlockSpec((E, G4), lambda b, i: (0, 0)),         # W_ih^T resident
                pl.BlockSpec((Hp, G4), lambda b, i: (0, 0)),        # W_hh^T resident
                pl.BlockSpec((1, G4), lambda b, i: (0, 0)),         # bias resident
            ],
            out_specs=pl.BlockSpec((tt, bb, Hp), lambda b, i: (i, b, 0)),
            scratch_shapes=[pltpu.VMEM((bb, Hp), jnp.float32),      # h carry
                            pltpu.VMEM((bb, Hp), jnp.float32)],     # c carry
        ),
        compiler_params=pltpu.CompilerParams(
            dimension_semantics=("parallel", "arbitrary"),          # time sequential
            vmem_limit_bytes=32 * 1024 * 1024),
    )(x, w_ih, w_hh, b_gates)
    return hs[:T]


# ---------------------------------------------------------------------------
# Dense bf16 matmul + bias for the vocab projection.  Grid is (N-tiles, M-tiles)
# with M innermost so the (K, tn) weight tile stays resident across the M sweep.
# ---------------------------------------------------------------------------
def _matmul_bias_kernel(x_ref, w_ref, b_ref, o_ref):
    o_ref[...] = (jnp.dot(x_ref[...], w_ref[...],
                          preferred_element_type=jnp.float32)
                  + b_ref[...]).astype(o_ref.dtype)


def matmul_bias(x, w, b, *, tm=512):
    """(M, K) bf16 @ (K, N) bf16 + (1, N) f32 -> (M, N) f32."""
    M, K = x.shape
    Kw, N = w.shape
    assert K == Kw
    x = x.astype(w.dtype)
    tm = min(tm, _round_up(M, 8))
    Mp = _round_up(M, tm)
    if N % 128 == 0:
        tn = 256 if N % 256 == 0 else 128
    else:
        tn = N                               # small / un-padded fallback: full dim
    if Mp != M:
        x = jnp.pad(x, ((0, Mp - M), (0, 0)))

    out = pl.pallas_call(
        _matmul_bias_kernel,
        out_shape=jax.ShapeDtypeStruct((Mp, N), jnp.float32),
        grid_spec=pltpu.PrefetchScalarGridSpec(
            num_scalar_prefetch=0,
            grid=(N // tn, Mp // tm),        # M innermost -> W tile fetched once
            in_specs=[
                pl.BlockSpec((tm, K), lambda j, i: (i, 0)),
                pl.BlockSpec((K, tn), lambda j, i: (0, j)),
                pl.BlockSpec((1, tn), lambda j, i: (0, j)),
            ],
            out_specs=pl.BlockSpec((tm, tn), lambda j, i: (i, j)),
        ),
        compiler_params=pltpu.CompilerParams(
            dimension_semantics=("parallel", "parallel"),
            vmem_limit_bytes=32 * 1024 * 1024),
    )(x, w, b)
    return out[:M] if Mp != M else out


# ---------------------------------------------------------------------------
# Parameter preparation: done ONCE (pre-transposed, per-gate lane padding,
# vocab padding, bf16 casts) so no weight copies happen per forward call.
# ---------------------------------------------------------------------------
def prepare_params(params):
    E = params["w_ih_t"].shape[0]
    H = params["w_hh_t"].shape[0]
    V = params["w_fc_t"].shape[1]
    Hp = _round_up(H, 128)
    Vp = _round_up(V, 128)

    def pad_gate_cols(w):                    # (..., 4H) -> (..., 4Hp), per-gate pad
        w4 = w.reshape(w.shape[:-1] + (4, H))
        w4 = jnp.pad(w4, [(0, 0)] * (w4.ndim - 1) + [(0, Hp - H)])
        return w4.reshape(w.shape[:-1] + (4 * Hp,))

    w_ih = pad_gate_cols(params["w_ih_t"])                               # (E, 4Hp)
    w_hh = jnp.pad(pad_gate_cols(params["w_hh_t"]), ((0, Hp - H), (0, 0)))
    b_g = pad_gate_cols((params["b_ih"] + params["b_hh"]).reshape(1, 4 * H))
    w_fc = jnp.pad(params["w_fc_t"], ((0, Hp - H), (0, Vp - V)))         # (Hp, Vp)
    b_fc = jnp.pad(params["b_fc"], ((0, Vp - V),)).reshape(1, Vp)

    return {
        "embed": params["embed"],
        "w_ih": w_ih.astype(jnp.bfloat16),
        "w_hh": w_hh.astype(jnp.bfloat16),
        "b_gates": b_g.astype(jnp.float32),
        "w_fc": w_fc.astype(jnp.bfloat16),
        "b_fc": b_fc.astype(jnp.float32),
        "E": E, "H": H, "Hp": Hp, "V": V, "Vp": Vp,
    }


# ---------------------------------------------------------------------------
# Full forward pass (matches PyTorch DecoderRNN.forward semantics).
# ---------------------------------------------------------------------------
def decoder_rnn_forward(features, captions, prep, *, tt=16, bb=None):
    """features: (B, E) f32, captions: (B, S) int32 -> logits (B, S, V) f32."""
    # TODO(synk): embedding gather + concat kept as XLA glue; could move in-kernel
    # with a scalar-prefetch row gather if HBM traffic on (B, T, E) ever matters.
    emb = jnp.take(prep["embed"], captions[:, :-1], axis=0)          # (B, S-1, E)
    inputs = jnp.concatenate([features[:, None, :], emb], axis=1)    # (B, T, E)
    B, T, _ = inputs.shape
    Hp, V, Vp = prep["Hp"], prep["V"], prep["Vp"]

    # Time-major, batch padded to 8 sublanes, bf16 activations (small tensor).
    Bp = _round_up(B, 8)
    x = jnp.transpose(inputs, (1, 0, 2)).astype(jnp.bfloat16)        # (T, B, E)
    if Bp != B:
        x = jnp.pad(x, ((0, 0), (0, Bp - B), (0, 0)))

    # (1) fused recurrence (input projection + recurrent matmul + gates).
    hs = lstm_recurrence(x, prep["w_ih"], prep["w_hh"], prep["b_gates"],
                         Hp=Hp, tt=tt, bb=bb)                        # (T, Bp, Hp) bf16

    # (2) hoisted FC projection, emitted batch-first so the big logits tensor is
    #     never transposed in HBM (only the small hs tensor is).
    hs_bt = jnp.transpose(hs[:, :B, :], (1, 0, 2)).reshape(B * T, Hp)
    logits = matmul_bias(hs_bt, prep["w_fc"], prep["b_fc"])          # (B*T, Vp) f32
    return logits.reshape(B, T, Vp)[:, :, :V]


def init_params(key, embed_size, hidden_size, vocab_size):
    ks = jax.random.split(key, 7)
    s = 0.1
    return {
        "embed":  s * jax.random.normal(ks[0], (vocab_size, embed_size), jnp.float32),
        # stored pre-transposed for the kernels / reference
        "w_ih_t": s * jax.random.normal(ks[1], (embed_size, 4 * hidden_size), jnp.float32),
        "w_hh_t": s * jax.random.normal(ks[2], (hidden_size, 4 * hidden_size), jnp.float32),
        "b_ih":   s * jax.random.normal(ks[3], (4 * hidden_size,), jnp.float32),
        "b_hh":   s * jax.random.normal(ks[4], (4 * hidden_size,), jnp.float32),
        "w_fc_t": s * jax.random.normal(ks[5], (hidden_size, vocab_size), jnp.float32),
        "b_fc":   s * jax.random.normal(ks[6], (vocab_size,), jnp.float32),
    }


def decoder_rnn_reference(features, captions, params):
    """Pure-JAX f32 reference (lax.scan LSTM) matching nn.LSTM / nn.Linear."""
    emb = jnp.take(params["embed"], captions[:, :-1], axis=0)
    inputs = jnp.concatenate([features[:, None, :], emb], axis=1)    # (B, T, E)
    B = inputs.shape[0]
    H = params["w_hh_t"].shape[0]
    b = params["b_ih"] + params["b_hh"]

    def step(carry, x_t):
        h, c = carry
        gates = x_t @ params["w_ih_t"] + h @ params["w_hh_t"] + b
        i = jax.nn.sigmoid(gates[:, 0 * H:1 * H])
        f = jax.nn.sigmoid(gates[:, 1 * H:2 * H])
        g = jnp.tanh(gates[:, 2 * H:3 * H])
        o = jax.nn.sigmoid(gates[:, 3 * H:4 * H])
        c_new = f * c + i * g
        h_new = o * jnp.tanh(c_new)
        return (h_new, c_new), h_new

    h0 = jnp.zeros((B, H), jnp.float32)
    (_, _), hs = jax.lax.scan(
        step, (h0, h0), jnp.transpose(inputs, (1, 0, 2)).astype(jnp.float32))
    out = hs @ params["w_fc_t"] + params["b_fc"]                     # (T, B, V)
    return jnp.transpose(out, (1, 0, 2))


if __name__ == "__main__":
    embed_size, hidden_size, vocab_size = 32, 32, 64
    batch, seq = 2, 8

    key = jax.random.PRNGKey(0)
    kp, kf, kc = jax.random.split(key, 3)
    params = init_params(kp, embed_size, hidden_size, vocab_size)
    prep = prepare_params(params)            # one-time pad / transpose / bf16 cast

    features = jax.random.normal(kf, (batch, embed_size), jnp.float32)
    captions = jax.random.randint(kc, (batch, seq), 0, vocab_size, jnp.int32)

    logits = decoder_rnn_forward(features, captions, prep)
    jax.block_until_ready(logits)

    ref = decoder_rnn_reference(features, captions, params)
    assert logits.shape == (batch, seq, vocab_size)
    # bf16 matmuls with f32 accumulation -> looser tolerance than the pure-f32 ref.
    assert jnp.allclose(logits, ref, atol=3e-2, rtol=3e-2)

    print("KERNEL_OK")
</pallas_src>

<mosaic_0001>
module attributes {stable_mosaic.version = 11 : i64} {
  func.func @_lstm_kernel(%arg0: i32, %arg1: i32, %arg2: memref<8x8x32xbf16, #tpu.memory_space<vmem>>, %arg3: memref<32x512xbf16, #tpu.memory_space<vmem>>, %arg4: memref<128x512xbf16, #tpu.memory_space<vmem>>, %arg5: memref<1x512xf32, #tpu.memory_space<vmem>>, %arg6: memref<8x8x128xbf16, #tpu.memory_space<vmem>>, %arg7: memref<8x128xf32, #tpu.memory_space<vmem>>, %arg8: memref<8x128xf32, #tpu.memory_space<vmem>>) attributes {dimension_semantics = [#tpu.dimension_semantics<parallel>, #tpu.dimension_semantics<arbitrary>], iteration_bounds = array<i64: 1, 1>, scalar_prefetch = 0 : i64, scratch_operands = 2 : i64, tpu.core_type = #tpu.core_type<tc>, window_params = [{transform_indices = @transform_0, window_bounds = array<i64: 8, 8, 32>}, {pipeline_mode = #tpu.pipeline_mode<synchronous>, transform_indices = @transform_1, window_bounds = array<i64: 32, 512>}, {pipeline_mode = #tpu.pipeline_mode<synchronous>, transform_indices = @transform_2, window_bounds = array<i64: 128, 512>}, {pipeline_mode = #tpu.pipeline_mode<synchronous>, transform_indices = @transform_3, window_bounds = array<i64: 1, 512>}, {transform_indices = @transform_4, window_bounds = array<i64: 8, 8, 128>}]} {
    %c0_i32 = arith.constant 0 : i32
    %0 = arith.cmpi eq, %arg1, %c0_i32 : i32
    %1 = arith.extui %0 : i1 to i32
    %c0_i32_0 = arith.constant 0 : i32
    %2 = arith.cmpi ne, %1, %c0_i32_0 : i32
    scf.if %2 {
      %cst_142 = arith.constant 0.000000e+00 : f32
      %350 = vector.broadcast %cst_142 : f32 to vector<8x128xf32>
      %c0_143 = arith.constant 0 : index
      %c0_144 = arith.constant 0 : index
      %351 = vector.load %arg7[%c0_143, %c0_144] : memref<8x128xf32, #tpu.memory_space<vmem>>, vector<8x128xf32>
      tpu.vector_store %arg7[%c0_143, %c0_144], %350 {strides = array<i32>} : memref<8x128xf32, #tpu.memory_space<vmem>>, vector<8x128xf32>,
      %cst_145 = arith.constant 0.000000e+00 : f32
      %352 = vector.broadcast %cst_145 : f32 to vector<8x128xf32>
      %c0_146 = arith.constant 0 : index
      %c0_147 = arith.constant 0 : index
      %353 = vector.load %arg8[%c0_146, %c0_147] : memref<8x128xf32, #tpu.memory_space<vmem>>, vector<8x128xf32>
      tpu.vector_store %arg8[%c0_146, %c0_147], %352 {strides = array<i32>} : memref<8x128xf32, #tpu.memory_space<vmem>>, vector<8x128xf32>,
    } else {
    }
    %c0 = arith.constant 0 : index
    %c0_1 = arith.constant 0 : index
    %3 = vector.load %arg3[%c0, %c0_1] : memref<32x512xbf16, #tpu.memory_space<vmem>>, vector<32x512xbf16>
    %c0_2 = arith.constant 0 : index
    %c0_3 = arith.constant 0 : index
    %4 = vector.load %arg4[%c0_2, %c0_3] : memref<128x512xbf16, #tpu.memory_space<vmem>>, vector<128x512xbf16>
    %c0_4 = arith.constant 0 : index
    %c0_5 = arith.constant 0 : index
    %5 = vector.load %arg5[%c0_4, %c0_5] : memref<1x512xf32, #tpu.memory_space<vmem>>, vector<1x512xf32>
    %c0_i32_6 = arith.constant 0 : i32
    %6 = arith.index_cast %c0_i32_6 : i32 to index
    %c0_7 = arith.constant 0 : index
    %c0_8 = arith.constant 0 : index
    %7 = vector.load %arg2[%6, %c0_7, %c0_8] : memref<8x8x32xbf16, #tpu.memory_space<vmem>>, vector<1x8x32xbf16>
    %8 = vector.shape_cast %7 : vector<1x8x32xbf16> to vector<8x32xbf16>
    %c0_9 = arith.constant 0 : index
    %c0_10 = arith.constant 0 : index
    %9 = vector.load %arg7[%c0_9, %c0_10] : memref<8x128xf32, #tpu.memory_space<vmem>>, vector<8x128xf32>
    %c0_11 = arith.constant 0 : index
    %c0_12 = arith.constant 0 : index
    %10 = vector.load %arg8[%c0_11, %c0_12] : memref<8x128xf32, #tpu.memory_space<vmem>>, vector<8x128xf32>
    %cst = arith.constant dense<0.000000e+00> : vector<8x512xf32>
    %11 = tpu.matmul %8, %3, %cst {dimension_numbers = #tpu.dot_dimension_numbers<[1], [0], [0], [1], [0, 0, 1, 1], [], []>} : vector<8x32xbf16>, vector<32x512xbf16>, vector<8x512xf32> -> vector<8x512xf32>
    %12 = arith.truncf %9 : vector<8x128xf32> to vector<8x128xbf16>
    %cst_13 = arith.constant dense<0.000000e+00> : vector<8x512xf32>
    %13 = tpu.matmul %12, %4, %cst_13 {dimension_numbers = #tpu.dot_dimension_numbers<[1], [0], [0], [1], [0, 0, 1, 1], [], []>} : vector<8x128xbf16>, vector<128x512xbf16>, vector<8x512xf32> -> vector<8x512xf32>
    %14 = arith.addf %11, %13 : vector<8x512xf32>
    %15 = vector.broadcast %5 : vector<1x512xf32> to vector<8x512xf32>
    %16 = arith.addf %14, %15 : vector<8x512xf32>
    %17 = vector.extract_strided_slice %16 {offsets = [0, 0], sizes = [8, 128], strides = [1, 1]} : vector<8x512xf32> to vector<8x128xf32>
    %18 = arith.negf %17 : vector<8x128xf32>
    %19 = math.exp %18 : vector<8x128xf32>
    %cst_14 = arith.constant 1.000000e+00 : f32
    %20 = vector.broadcast %cst_14 : f32 to vector<8x128xf32>
    %21 = arith.addf %20, %19 : vector<8x128xf32>
    %22 = arith.divf %20, %21 : vector<8x128xf32>
    %23 = vector.extract_strided_slice %16 {offsets = [0, 128], sizes = [8, 128], strides = [1, 1]} : vector<8x512xf32> to vector<8x128xf32>
    %24 = arith.negf %23 : vector<8x128xf32>
    %25 = math.exp %24 : vector<8x128xf32>
    %cst_15 = arith.constant 1.000000e+00 : f32
    %26 = vector.broadcast %cst_15 : f32 to vector<8x128xf32>
    %27 = arith.addf %26, %25 : vector<8x128xf32>
    %28 = arith.divf %26, %27 : vector<8x128xf32>
    %29 = vector.extract_strided_slice %16 {offsets = [0, 256], sizes = [8, 128], strides = [1, 1]} : vector<8x512xf32> to vector<8x128xf32>
    %30 = math.tanh %29 : vector<8x128xf32>
    %31 = vector.extract_strided_slice %16 {offsets = [0, 384], sizes = [8, 128], strides = [1, 1]} : vector<8x512xf32> to vector<8x128xf32>
    %32 = arith.negf %31 : vector<8x128xf32>
    %33 = math.exp %32 : vector<8x128xf32>
    %cst_16 = arith.constant 1.000000e+00 : f32
    %34 = vector.broadcast %cst_16 : f32 to vector<8x128xf32>
    %35 = arith.addf %34, %33 : vector<8x128xf32>
    %36 = arith.divf %34, %35 : vector<8x128xf32>
    %37 = arith.mulf %28, %10 : vector<8x128xf32>
    %38 = arith.mulf %22, %30 : vector<8x128xf32>
    %39 = arith.addf %37, %38 : vector<8x128xf32>
    %40 = math.tanh %39 : vector<8x128xf32>
    %41 = arith.mulf %36, %40 : vector<8x128xf32>
    %c0_17 = arith.constant 0 : index
    %c0_18 = arith.constant 0 : index
    %42 = vector.load %arg8[%c0_17, %c0_18] : memref<8x128xf32, #tpu.memory_space<vmem>>, vector<8x128xf32>
    tpu.vector_store %arg8[%c0_17, %c0_18], %39 {strides = array<i32>} : memref<8x128xf32, #tpu.memory_space<vmem>>, vector<8x128xf32>,
    %c0_19 = arith.constant 0 : index
    %c0_20 = arith.constant 0 : index
    %43 = vector.load %arg7[%c0_19, %c0_20] : memref<8x128xf32, #tpu.memory_space<vmem>>, vector<8x128xf32>
    tpu.vector_store %arg7[%c0_19, %c0_20], %41 {strides = array<i32>} : memref<8x128xf32, #tpu.memory_space<vmem>>, vector<8x128xf32>,
    %44 = arith.truncf %41 : vector<8x128xf32> to vector<8x128xbf16>
    %45 = arith.index_cast %c0_i32_6 : i32 to index
    %c0_21 = arith.constant 0 : index
    %c0_22 = arith.constant 0 : index
    %46 = vector.load %arg6[%45, %c0_21, %c0_22] : memref<8x8x128xbf16, #tpu.memory_space<vmem>>, vector<1x8x128xbf16>
    %47 = vector.shape_cast %46 : vector<1x8x128xbf16> to vector<8x128xbf16>
    %48 = vector.shape_cast %44 : vector<8x128xbf16> to vector<1x8x128xbf16>
    tpu.vector_store %arg6[%45, %c0_21, %c0_22], %48 {strides = array<i32>} : memref<8x8x128xbf16, #tpu.memory_space<vmem>>, vector<1x8x128xbf16>,
    %c1_i32 = arith.constant 1 : i32
    %49 = arith.index_cast %c1_i32 : i32 to index
    %c0_23 = arith.constant 0 : index
    %c0_24 = arith.constant 0 : index
    %50 = vector.load %arg2[%49, %c0_23, %c0_24] : memref<8x8x32xbf16, #tpu.memory_space<vmem>>, vector<1x8x32xbf16>
    %51 = vector.shape_cast %50 : vector<1x8x32xbf16> to vector<8x32xbf16>
    %c0_25 = arith.constant 0 : index
    %c0_26 = arith.constant 0 : index
    %52 = vector.load %arg7[%c0_25, %c0_26] : memref<8x128xf32, #tpu.memory_space<vmem>>, vector<8x128xf32>
    %c0_27 = arith.constant 0 : index
    %c0_28 = arith.constant 0 : index
    %53 = vector.load %arg8[%c0_27, %c0_28] : memref<8x128xf32, #tpu.memory_space<vmem>>, vector<8x128xf32>
    %cst_29 = arith.constant dense<0.000000e+00> : vector<8x512xf32>
    %54 = tpu.matmul %51, %3, %cst_29 {dimension_numbers = #tpu.dot_dimension_numbers<[1], [0], [0], [1], [0, 0, 1, 1], [], []>} : vector<8x32xbf16>, vector<32x512xbf16>, vector<8x512xf32> -> vector<8x512xf32>
    %55 = arith.truncf %52 : vector<8x128xf32> to vector<8x128xbf16>
    %cst_30 = arith.constant dense<0.000000e+00> : vector<8x512xf32>
    %56 = tpu.matmul %55, %4, %cst_30 {dimension_numbers = #tpu.dot_dimension_numbers<[1], [0], [0], [1], [0, 0, 1, 1], [], []>} : vector<8x128xbf16>, vector<128x512xbf16>, vector<8x512xf32> -> vector<8x512xf32>
    %57 = arith.addf %54, %56 : vector<8x512xf32>
    %58 = vector.broadcast %5 : vector<1x512xf32> to vector<8x512xf32>
    %59 = arith.addf %57, %58 : vector<8x512xf32>
    %60 = vector.extract_strided_slice %59 {offsets = [0, 0], sizes = [8, 128], strides = [1, 1]} : vector<8x512xf32> to vector<8x128xf32>
    %61 = arith.negf %60 : vector<8x128xf32>
    %62 = math.exp %61 : vector<8x128xf32>
    %cst_31 = arith.constant 1.000000e+00 : f32
    %63 = vector.broadcast %cst_31 : f32 to vector<8x128xf32>
    %64 = arith.addf %63, %62 : vector<8x128xf32>
    %65 = arith.divf %63, %64 : vector<8x128xf32>
    %66 = vector.extract_strided_slice %59 {offsets = [0, 128], sizes = [8, 128], strides = [1, 1]} : vector<8x512xf32> to vector<8x128xf32>
    %67 = arith.negf %66 : vector<8x128xf32>
    %68 = math.exp %67 : vector<8x128xf32>
    %cst_32 = arith.constant 1.000000e+00 : f32
    %69 = vector.broadcast %cst_32 : f32 to vector<8x128xf32>
    %70 = arith.addf %69, %68 : vector<8x128xf32>
    %71 = arith.divf %69, %70 : vector<8x128xf32>
    %72 = vector.extract_strided_slice %59 {offsets = [0, 256], sizes = [8, 128], strides = [1, 1]} : vector<8x512xf32> to vector<8x128xf32>
    %73 = math.tanh %72 : vector<8x128xf32>
    %74 = vector.extract_strided_slice %59 {offsets = [0, 384], sizes = [8, 128], strides = [1, 1]} : vector<8x512xf32> to vector<8x128xf32>
    %75 = arith.negf %74 : vector<8x128xf32>
    %76 = math.exp %75 : vector<8x128xf32>
    %cst_33 = arith.constant 1.000000e+00 : f32
    %77 = vector.broadcast %cst_33 : f32 to vector<8x128xf32>
    %78 = arith.addf %77, %76 : vector<8x128xf32>
    %79 = arith.divf %77, %78 : vector<8x128xf32>
    %80 = arith.mulf %71, %53 : vector<8x128xf32>
    %81 = arith.mulf %65, %73 : vector<8x128xf32>
    %82 = arith.addf %80, %81 : vector<8x128xf32>
    %83 = math.tanh %82 : vector<8x128xf32>
    %84 = arith.mulf %79, %83 : vector<8x128xf32>
    %c0_34 = arith.constant 0 : index
    %c0_35 = arith.constant 0 : index
    %85 = vector.load %arg8[%c0_34, %c0_35] : memref<8x128xf32, #tpu.memory_space<vmem>>, vector<8x128xf32>
    tpu.vector_store %arg8[%c0_34, %c0_35], %82 {strides = array<i32>} : memref<8x128xf32, #tpu.memory_space<vmem>>, vector<8x128xf32>,
    %c0_36 = arith.constant 0 : index
    %c0_37 = arith.constant 0 : index
    %86 = vector.load %arg7[%c0_36, %c0_37] : memref<8x128xf32, #tpu.memory_space<vmem>>, vector<8x128xf32>
    tpu.vector_store %arg7[%c0_36, %c0_37], %84 {strides = array<i32>} : memref<8x128xf32, #tpu.memory_space<vmem>>, vector<8x128xf32>,
    %87 = arith.truncf %84 : vector<8x128xf32> to vector<8x128xbf16>
    %88 = arith.index_cast %c1_i32 : i32 to index
    %c0_38 = arith.constant 0 : index
    %c0_39 = arith.constant 0 : index
    %89 = vector.load %arg6[%88, %c0_38, %c0_39] : memref<8x8x128xbf16, #tpu.memory_space<vmem>>, vector<1x8x128xbf16>
    %90 = vector.shape_cast %89 : vector<1x8x128xbf16> to vector<8x128xbf16>
    %91 = vector.shape_cast %87 : vector<8x128xbf16> to vector<1x8x128xbf16>
    tpu.vector_store %arg6[%88, %c0_38, %c0_39], %91 {strides = array<i32>} : memref<8x8x128xbf16, #tpu.memory_space<vmem>>, vector<1x8x128xbf16>,
    %c2_i32 = arith.constant 2 : i32
    %92 = arith.index_cast %c2_i32 : i32 to index
    %c0_40 = arith.constant 0 : index
    %c0_41 = arith.constant 0 : index
    %93 = vector.load %arg2[%92, %c0_40, %c0_41] : memref<8x8x32xbf16, #tpu.memory_space<vmem>>, vector<1x8x32xbf16>
    %94 = vector.shape_cast %93 : vector<1x8x32xbf16> to vector<8x32xbf16>
    %c0_42 = arith.constant 0 : index
    %c0_43 = arith.constant 0 : index
    %95 = vector.load %arg7[%c0_42, %c0_43] : memref<8x128xf32, #tpu.memory_space<vmem>>, vector<8x128xf32>
    %c0_44 = arith.constant 0 : index
    %c0_45 = arith.constant 0 : index
    %96 = vector.load %arg8[%c0_44, %c0_45] : memref<8x128xf32, #tpu.memory_space<vmem>>, vector<8x128xf32>
    %cst_46 = arith.constant dense<0.000000e+00> : vector<8x512xf32>
    %97 = tpu.matmul %94, %3, %cst_46 {dimension_numbers = #tpu.dot_dimension_numbers<[1], [0], [0], [1], [0, 0, 1, 1], [], []>} : vector<8x32xbf16>, vector<32x512xbf16>, vector<8x512xf32> -> vector<8x512xf32>
    %98 = arith.truncf %95 : vector<8x128xf32> to vector<8x128xbf16>
    %cst_47 = arith.constant dense<0.000000e+00> : vector<8x512xf32>
    %99 = tpu.matmul %98, %4, %cst_47 {dimension_numbers = #tpu.dot_dimension_numbers<[1], [0], [0], [1], [0, 0, 1, 1], [], []>} : vector<8x128xbf16>, vector<128x512xbf16>, vector<8x512xf32> -> vector<8x512xf32>
    %100 = arith.addf %97, %99 : vector<8x512xf32>
    %101 = vector.broadcast %5 : vector<1x512xf32> to vector<8x512xf32>
    %102 = arith.addf %100, %101 : vector<8x512xf32>
    %103 = vector.extract_strided_slice %102 {offsets = [0, 0], sizes = [8, 128], strides = [1, 1]} : vector<8x512xf32> to vector<8x128xf32>
    %104 = arith.negf %103 : vector<8x128xf32>
    %105 = math.exp %104 : vector<8x128xf32>
    %cst_48 = arith.constant 1.000000e+00 : f32
    %106 = vector.broadcast %cst_48 : f32 to vector<8x128xf32>
    %107 = arith.addf %106, %105 : vector<8x128xf32>
    %108 = arith.divf %106, %107 : vector<8x128xf32>
    %109 = vector.extract_strided_slice %102 {offsets = [0, 128], sizes = [8, 128], strides = [1, 1]} : vector<8x512xf32> to vector<8x128xf32>
    %110 = arith.negf %109 : vector<8x128xf32>
    %111 = math.exp %110 : vector<8x128xf32>
    %cst_49 = arith.constant 1.000000e+00 : f32
    %112 = vector.broadcast %cst_49 : f32 to vector<8x128xf32>
    %113 = arith.addf %112, %111 : vector<8x128xf32>
    %114 = arith.divf %112, %113 : vector<8x128xf32>
    %115 = vector.extract_strided_slice %102 {offsets = [0, 256], sizes = [8, 128], strides = [1, 1]} : vector<8x512xf32> to vector<8x128xf32>
    %116 = math.tanh %115 : vector<8x128xf32>
    %117 = vector.extract_strided_slice %102 {offsets = [0, 384], sizes = [8, 128], strides = [1, 1]} : vector<8x512xf32> to vector<8x128xf32>
    %118 = arith.negf %117 : vector<8x128xf32>
    %119 = math.exp %118 : vector<8x128xf32>
    %cst_50 = arith.constant 1.000000e+00 : f32
    %120 = vector.broadcast %cst_50 : f32 to vector<8x128xf32>
    %121 = arith.addf %120, %119 : vector<8x128xf32>
    %122 = arith.divf %120, %121 : vector<8x128xf32>
    %123 = arith.mulf %114, %96 : vector<8x128xf32>
    %124 = arith.mulf %108, %116 : vector<8x128xf32>
    %125 = arith.addf %123, %124 : vector<8x128xf32>
    %126 = math.tanh %125 : vector<8x128xf32>
    %127 = arith.mulf %122, %126 : vector<8x128xf32>
    %c0_51 = arith.constant 0 : index
    %c0_52 = arith.constant 0 : index
    %128 = vector.load %arg8[%c0_51, %c0_52] : memref<8x128xf32, #tpu.memory_space<vmem>>, vector<8x128xf32>
    tpu.vector_store %arg8[%c0_51, %c0_52], %125 {strides = array<i32>} : memref<8x128xf32, #tpu.memory_space<vmem>>, vector<8x128xf32>,
    %c0_53 = arith.constant 0 : index
    %c0_54 = arith.constant 0 : index
    %129 = vector.load %arg7[%c0_53, %c0_54] : memref<8x128xf32, #tpu.memory_space<vmem>>, vector<8x128xf32>
    tpu.vector_store %arg7[%c0_53, %c0_54], %127 {strides = array<i32>} : memref<8x128xf32, #tpu.memory_space<vmem>>, vector<8x128xf32>,
    %130 = arith.truncf %127 : vector<8x128xf32> to vector<8x128xbf16>
    %131 = arith.index_cast %c2_i32 : i32 to index
    %c0_55 = arith.constant 0 : index
    %c0_56 = arith.constant 0 : index
    %132 = vector.load %arg6[%131, %c0_55, %c0_56] : memref<8x8x128xbf16, #tpu.memory_space<vmem>>, vector<1x8x128xbf16>
    %133 = vector.shape_cast %132 : vector<1x8x128xbf16> to vector<8x128xbf16>
    %134 = vector.shape_cast %130 : vector<8x128xbf16> to vector<1x8x128xbf16>
    tpu.vector_store %arg6[%131, %c0_55, %c0_56], %134 {strides = array<i32>} : memref<8x8x128xbf16, #tpu.memory_space<vmem>>, vector<1x8x128xbf16>,
    %c3_i32 = arith.constant 3 : i32
    %135 = arith.index_cast %c3_i32 : i32 to index
    %c0_57 = arith.constant 0 : index
    %c0_58 = arith.constant 0 : index
    %136 = vector.load %arg2[%135, %c0_57, %c0_58] : memref<8x8x32xbf16, #tpu.memory_space<vmem>>, vector<1x8x32xbf16>
    %137 = vector.shape_cast %136 : vector<1x8x32xbf16> to vector<8x32xbf16>
    %c0_59 = arith.constant 0 : index
    %c0_60 = arith.constant 0 : index
    %138 = vector.load %arg7[%c0_59, %c0_60] : memref<8x128xf32, #tpu.memory_space<vmem>>, vector<8x128xf32>
    %c0_61 = arith.constant 0 : index
    %c0_62 = arith.constant 0 : index
    %139 = vector.load %arg8[%c0_61, %c0_62] : memref<8x128xf32, #tpu.memory_space<vmem>>, vector<8x128xf32>
    %cst_63 = arith.constant dense<0.000000e+00> : vector<8x512xf32>
    %140 = tpu.matmul %137, %3, %cst_63 {dimension_numbers = #tpu.dot_dimension_numbers<[1], [0], [0], [1], [0, 0, 1, 1], [], []>} : vector<8x32xbf16>, vector<32x512xbf16>, vector<8x512xf32> -> vector<8x512xf32>
    %141 = arith.truncf %138 : vector<8x128xf32> to vector<8x128xbf16>
    %cst_64 = arith.constant dense<0.000000e+00> : vector<8x512xf32>
    %142 = tpu.matmul %141, %4, %cst_64 {dimension_numbers = #tpu.dot_dimension_numbers<[1], [0], [0], [1], [0, 0, 1, 1], [], []>} : vector<8x128xbf16>, vector<128x512xbf16>, vector<8x512xf32> -> vector<8x512xf32>
    %143 = arith.addf %140, %142 : vector<8x512xf32>
    %144 = vector.broadcast %5 : vector<1x512xf32> to vector<8x512xf32>
    %145 = arith.addf %143, %144 : vector<8x512xf32>
    %146 = vector.extract_strided_slice %145 {offsets = [0, 0], sizes = [8, 128], strides = [1, 1]} : vector<8x512xf32> to vector<8x128xf32>
    %147 = arith.negf %146 : vector<8x128xf32>
    %148 = math.exp %147 : vector<8x128xf32>
    %cst_65 = arith.constant 1.000000e+00 : f32
    %149 = vector.broadcast %cst_65 : f32 to vector<8x128xf32>
    %150 = arith.addf %149, %148 : vector<8x128xf32>
    %151 = arith.divf %149, %150 : vector<8x128xf32>
    %152 = vector.extract_strided_slice %145 {offsets = [0, 128], sizes = [8, 128], strides = [1, 1]} : vector<8x512xf32> to vector<8x128xf32>
    %153 = arith.negf %152 : vector<8x128xf32>
    %154 = math.exp %153 : vector<8x128xf32>
    %cst_66 = arith.constant 1.000000e+00 : f32
    %155 = vector.broadcast %cst_66 : f32 to vector<8x128xf32>
    %156 = arith.addf %155, %154 : vector<8x128xf32>
    %157 = arith.divf %155, %156 : vector<8x128xf32>
    %158 = vector.extract_strided_slice %145 {offsets = [0, 256], sizes = [8, 128], strides = [1, 1]} : vector<8x512xf32> to vector<8x128xf32>
    %159 = math.tanh %158 : vector<8x128xf32>
    %160 = vector.extract_strided_slice %145 {offsets = [0, 384], sizes = [8, 128], strides = [1, 1]} : vector<8x512xf32> to vector<8x128xf32>
    %161 = arith.negf %160 : vector<8x128xf32>
    %162 = math.exp %161 : vector<8x128xf32>
    %cst_67 = arith.constant 1.000000e+00 : f32
    %163 = vector.broadcast %cst_67 : f32 to vector<8x128xf32>
    %164 = arith.addf %163, %162 : vector<8x128xf32>
    %165 = arith.divf %163, %164 : vector<8x128xf32>
    %166 = arith.mulf %157, %139 : vector<8x128xf32>
    %167 = arith.mulf %151, %159 : vector<8x128xf32>
    %168 = arith.addf %166, %167 : vector<8x128xf32>
    %169 = math.tanh %168 : vector<8x128xf32>
    %170 = arith.mulf %165, %169 : vector<8x128xf32>
    %c0_68 = arith.constant 0 : index
    %c0_69 = arith.constant 0 : index
    %171 = vector.load %arg8[%c0_68, %c0_69] : memref<8x128xf32, #tpu.memory_space<vmem>>, vector<8x128xf32>
    tpu.vector_store %arg8[%c0_68, %c0_69], %168 {strides = array<i32>} : memref<8x128xf32, #tpu.memory_space<vmem>>, vector<8x128xf32>,
    %c0_70 = arith.constant 0 : index
    %c0_71 = arith.constant 0 : index
    %172 = vector.load %arg7[%c0_70, %c0_71] : memref<8x128xf32, #tpu.memory_space<vmem>>, vector<8x128xf32>
    tpu.vector_store %arg7[%c0_70, %c0_71], %170 {strides = array<i32>} : memref<8x128xf32, #tpu.memory_space<vmem>>, vector<8x128xf32>,
    %173 = arith.truncf %170 : vector<8x128xf32> to vector<8x128xbf16>
    %174 = arith.index_cast %c3_i32 : i32 to index
    %c0_72 = arith.constant 0 : index
    %c0_73 = arith.constant 0 : index
    %175 = vector.load %arg6[%174, %c0_72, %c0_73] : memref<8x8x128xbf16, #tpu.memory_space<vmem>>, vector<1x8x128xbf16>
    %176 = vector.shape_cast %175 : vector<1x8x128xbf16> to vector<8x128xbf16>
    %177 = vector.shape_cast %173 : vector<8x128xbf16> to vector<1x8x128xbf16>
    tpu.vector_store %arg6[%174, %c0_72, %c0_73], %177 {strides = array<i32>} : memref<8x8x128xbf16, #tpu.memory_space<vmem>>, vector<1x8x128xbf16>,
    %c4_i32 = arith.constant 4 : i32
    %178 = arith.index_cast %c4_i32 : i32 to index
    %c0_74 = arith.constant 0 : index
    %c0_75 = arith.constant 0 : index
    %179 = vector.load %arg2[%178, %c0_74, %c0_75] : memref<8x8x32xbf16, #tpu.memory_space<vmem>>, vector<1x8x32xbf16>
    %180 = vector.shape_cast %179 : vector<1x8x32xbf16> to vector<8x32xbf16>
    %c0_76 = arith.constant 0 : index
    %c0_77 = arith.constant 0 : index
    %181 = vector.load %arg7[%c0_76, %c0_77] : memref<8x128xf32, #tpu.memory_space<vmem>>, vector<8x128xf32>
    %c0_78 = arith.constant 0 : index
    %c0_79 = arith.constant 0 : index
    %182 = vector.load %arg8[%c0_78, %c0_79] : memref<8x128xf32, #tpu.memory_space<vmem>>, vector<8x128xf32>
    %cst_80 = arith.constant dense<0.000000e+00> : vector<8x512xf32>
    %183 = tpu.matmul %180, %3, %cst_80 {dimension_numbers = #tpu.dot_dimension_numbers<[1], [0], [0], [1], [0, 0, 1, 1], [], []>} : vector<8x32xbf16>, vector<32x512xbf16>, vector<8x512xf32> -> vector<8x512xf32>
    %184 = arith.truncf %181 : vector<8x128xf32> to vector<8x128xbf16>
    %cst_81 = arith.constant dense<0.000000e+00> : vector<8x512xf32>
    %185 = tpu.matmul %184, %4, %cst_81 {dimension_numbers = #tpu.dot_dimension_numbers<[1], [0], [0], [1], [0, 0, 1, 1], [], []>} : vector<8x128xbf16>, vector<128x512xbf16>, vector<8x512xf32> -> vector<8x512xf32>
    %186 = arith.addf %183, %185 : vector<8x512xf32>
    %187 = vector.broadcast %5 : vector<1x512xf32> to vector<8x512xf32>
    %188 = arith.addf %186, %187 : vector<8x512xf32>
    %189 = vector.extract_strided_slice %188 {offsets = [0, 0], sizes = [8, 128], strides = [1, 1]} : vector<8x512xf32> to vector<8x128xf32>
    %190 = arith.negf %189 : vector<8x128xf32>
    %191 = math.exp %190 : vector<8x128xf32>
    %cst_82 = arith.constant 1.000000e+00 : f32
    %192 = vector.broadcast %cst_82 : f32 to vector<8x128xf32>
    %193 = arith.addf %192, %191 : vector<8x128xf32>
    %194 = arith.divf %192, %193 : vector<8x128xf32>
    %195 = vector.extract_strided_slice %188 {offsets = [0, 128], sizes = [8, 128], strides = [1, 1]} : vector<8x512xf32> to vector<8x128xf32>
    %196 = arith.negf %195 : vector<8x128xf32>
    %197 = math.exp %196 : vector<8x128xf32>
    %cst_83 = arith.constant 1.000000e+00 : f32
    %198 = vector.broadcast %cst_83 : f32 to vector<8x128xf32>
    %199 = arith.addf %198, %197 : vector<8x128xf32>
    %200 = arith.divf %198, %199 : vector<8x128xf32>
    %201 = vector.extract_strided_slice %188 {offsets = [0, 256], sizes = [8, 128], strides = [1, 1]} : vector<8x512xf32> to vector<8x128xf32>
    %202 = math.tanh %201 : vector<8x128xf32>
    %203 = vector.extract_strided_slice %188 {offsets = [0, 384], sizes = [8, 128], strides = [1, 1]} : vector<8x512xf32> to vector<8x128xf32>
    %204 = arith.negf %203 : vector<8x128xf32>
    %205 = math.exp %204 : vector<8x128xf32>
    %cst_84 = arith.constant 1.000000e+00 : f32
    %206 = vector.broadcast %cst_84 : f32 to vector<8x128xf32>
    %207 = arith.addf %206, %205 : vector<8x128xf32>
    %208 = arith.divf %206, %207 : vector<8x128xf32>
    %209 = arith.mulf %200, %182 : vector<8x128xf32>
    %210 = arith.mulf %194, %202 : vector<8x128xf32>
    %211 = arith.addf %209, %210 : vector<8x128xf32>
    %212 = math.tanh %211 : vector<8x128xf32>
    %213 = arith.mulf %208, %212 : vector<8x128xf32>
    %c0_85 = arith.constant 0 : index
    %c0_86 = arith.constant 0 : index
    %214 = vector.load %arg8[%c0_85, %c0_86] : memref<8x128xf32, #tpu.memory_space<vmem>>, vector<8x128xf32>
    tpu.vector_store %arg8[%c0_85, %c0_86], %211 {strides = array<i32>} : memref<8x128xf32, #tpu.memory_space<vmem>>, vector<8x128xf32>,
    %c0_87 = arith.constant 0 : index
    %c0_88 = arith.constant 0 : index
    %215 = vector.load %arg7[%c0_87, %c0_88] : memref<8x128xf32, #tpu.memory_space<vmem>>, vector<8x128xf32>
    tpu.vector_store %arg7[%c0_87, %c0_88], %213 {strides = array<i32>} : memref<8x128xf32, #tpu.memory_space<vmem>>, vector<8x128xf32>,
    %216 = arith.truncf %213 : vector<8x128xf32> to vector<8x128xbf16>
    %217 = arith.index_cast %c4_i32 : i32 to index
    %c0_89 = arith.constant 0 : index
    %c0_90 = arith.constant 0 : index
    %218 = vector.load %arg6[%217, %c0_89, %c0_90] : memref<8x8x128xbf16, #tpu.memory_space<vmem>>, vector<1x8x128xbf16>
    %219 = vector.shape_cast %218 : vector<1x8x128xbf16> to vector<8x128xbf16>
    %220 = vector.shape_cast %216 : vector<8x128xbf16> to vector<1x8x128xbf16>
    tpu.vector_store %arg6[%217, %c0_89, %c0_90], %220 {strides = array<i32>} : memref<8x8x128xbf16, #tpu.memory_space<vmem>>, vector<1x8x128xbf16>,
    %c5_i32 = arith.constant 5 : i32
    %221 = arith.index_cast %c5_i32 : i32 to index
    %c0_91 = arith.constant 0 : index
    %c0_92 = arith.constant 0 : index
    %222 = vector.load %arg2[%221, %c0_91, %c0_92] : memref<8x8x32xbf16, #tpu.memory_space<vmem>>, vector<1x8x32xbf16>
    %223 = vector.shape_cast %222 : vector<1x8x32xbf16> to vector<8x32xbf16>
    %c0_93 = arith.constant 0 : index
    %c0_94 = arith.constant 0 : index
    %224 = vector.load %arg7[%c0_93, %c0_94] : memref<8x128xf32, #tpu.memory_space<vmem>>, vector<8x128xf32>
    %c0_95 = arith.constant 0 : index
    %c0_96 = arith.constant 0 : index
    %225 = vector.load %arg8[%c0_95, %c0_96] : memref<8x128xf32, #tpu.memory_space<vmem>>, vector<8x128xf32>
    %cst_97 = arith.constant dense<0.000000e+00> : vector<8x512xf32>
    %226 = tpu.matmul %223, %3, %cst_97 {dimension_numbers = #tpu.dot_dimension_numbers<[1], [0], [0], [1], [0, 0, 1, 1], [], []>} : vector<8x32xbf16>, vector<32x512xbf16>, vector<8x512xf32> -> vector<8x512xf32>
    %227 = arith.truncf %224 : vector<8x128xf32> to vector<8x128xbf16>
    %cst_98 = arith.constant dense<0.000000e+00> : vector<8x512xf32>
    %228 = tpu.matmul %227, %4, %cst_98 {dimension_numbers = #tpu.dot_dimension_numbers<[1], [0], [0], [1], [0, 0, 1, 1], [], []>} : vector<8x128xbf16>, vector<128x512xbf16>, vector<8x512xf32> -> vector<8x512xf32>
    %229 = arith.addf %226, %228 : vector<8x512xf32>
    %230 = vector.broadcast %5 : vector<1x512xf32> to vector<8x512xf32>
    %231 = arith.addf %229, %230 : vector<8x512xf32>
    %232 = vector.extract_strided_slice %231 {offsets = [0, 0], sizes = [8, 128], strides = [1, 1]} : vector<8x512xf32> to vector<8x128xf32>
    %233 = arith.negf %232 : vector<8x128xf32>
    %234 = math.exp %233 : vector<8x128xf32>
    %cst_99 = arith.constant 1.000000e+00 : f32
    %235 = vector.broadcast %cst_99 : f32 to vector<8x128xf32>
    %236 = arith.addf %235, %234 : vector<8x128xf32>
    %237 = arith.divf %235, %236 : vector<8x128xf32>
    %238 = vector.extract_strided_slice %231 {offsets = [0, 128], sizes = [8, 128], strides = [1, 1]} : vector<8x512xf32> to vector<8x128xf32>
    %239 = arith.negf %238 : vector<8x128xf32>
    %240 = math.exp %239 : vector<8x128xf32>
    %cst_100 = arith.constant 1.000000e+00 : f32
    %241 = vector.broadcast %cst_100 : f32 to vector<8x128xf32>
    %242 = arith.addf %241, %240 : vector<8x128xf32>
    %243 = arith.divf %241, %242 : vector<8x128xf32>
    %244 = vector.extract_strided_slice %231 {offsets = [0, 256], sizes = [8, 128], strides = [1, 1]} : vector<8x512xf32> to vector<8x128xf32>
    %245 = math.tanh %244 : vector<8x128xf32>
    %246 = vector.extract_strided_slice %231 {offsets = [0, 384], sizes = [8, 128], strides = [1, 1]} : vector<8x512xf32> to vector<8x128xf32>
    %247 = arith.negf %246 : vector<8x128xf32>
    %248 = math.exp %247 : vector<8x128xf32>
    %cst_101 = arith.constant 1.000000e+00 : f32
    %249 = vector.broadcast %cst_101 : f32 to vector<8x128xf32>
    %250 = arith.addf %249, %248 : vector<8x128xf32>
    %251 = arith.divf %249, %250 : vector<8x128xf32>
    %252 = arith.mulf %243, %225 : vector<8x128xf32>
    %253 = arith.mulf %237, %245 : vector<8x128xf32>
    %254 = arith.addf %252, %253 : vector<8x128xf32>
    %255 = math.tanh %254 : vector<8x128xf32>
    %256 = arith.mulf %251, %255 : vector<8x128xf32>
    %c0_102 = arith.constant 0 : index
    %c0_103 = arith.constant 0 : index
    %257 = vector.load %arg8[%c0_102, %c0_103] : memref<8x128xf32, #tpu.memory_space<vmem>>, vector<8x128xf32>
    tpu.vector_store %arg8[%c0_102, %c0_103], %254 {strides = array<i32>} : memref<8x128xf32, #tpu.memory_space<vmem>>, vector<8x128xf32>,
    %c0_104 = arith.constant 0 : index
    %c0_105 = arith.constant 0 : index
    %258 = vector.load %arg7[%c0_104, %c0_105] : memref<8x128xf32, #tpu.memory_space<vmem>>, vector<8x128xf32>
    tpu.vector_store %arg7[%c0_104, %c0_105], %256 {strides = array<i32>} : memref<8x128xf32, #tpu.memory_space<vmem>>, vector<8x128xf32>,
    %259 = arith.truncf %256 : vector<8x128xf32> to vector<8x128xbf16>
    %260 = arith.index_cast %c5_i32 : i32 to index
    %c0_106 = arith.constant 0 : index
    %c0_107 = arith.constant 0 : index
    %261 = vector.load %arg6[%260, %c0_106, %c0_107] : memref<8x8x128xbf16, #tpu.memory_space<vmem>>, vector<1x8x128xbf16>
    %262 = vector.shape_cast %261 : vector<1x8x128xbf16> to vector<8x128xbf16>
    %263 = vector.shape_cast %259 : vector<8x128xbf16> to vector<1x8x128xbf16>
    tpu.vector_store %arg6[%260, %c0_106, %c0_107], %263 {strides = array<i32>} : memref<8x8x128xbf16, #tpu.memory_space<vmem>>, vector<1x8x128xbf16>,
    %c6_i32 = arith.constant 6 : i32
    %264 = arith.index_cast %c6_i32 : i32 to index
    %c0_108 = arith.constant 0 : index
    %c0_109 = arith.constant 0 : index
    %265 = vector.load %arg2[%264, %c0_108, %c0_109] : memref<8x8x32xbf16, #tpu.memory_space<vmem>>, vector<1x8x32xbf16>
    %266 = vector.shape_cast %265 : vector<1x8x32xbf16> to vector<8x32xbf16>
    %c0_110 = arith.constant 0 : index
    %c0_111 = arith.constant 0 : index
    %267 = vector.load %arg7[%c0_110, %c0_111] : memref<8x128xf32, #tpu.memory_space<vmem>>, vector<8x128xf32>
    %c0_112 = arith.constant 0 : index
    %c0_113 = arith.constant 0 : index
    %268 = vector.load %arg8[%c0_112, %c0_113] : memref<8x128xf32, #tpu.memory_space<vmem>>, vector<8x128xf32>
    %cst_114 = arith.constant dense<0.000000e+00> : vector<8x512xf32>
    %269 = tpu.matmul %266, %3, %cst_114 {dimension_numbers = #tpu.dot_dimension_numbers<[1], [0], [0], [1], [0, 0, 1, 1], [], []>} : vector<8x32xbf16>, vector<32x512xbf16>, vector<8x512xf32> -> vector<8x512xf32>
    %270 = arith.truncf %267 : vector<8x128xf32> to vector<8x128xbf16>
    %cst_115 = arith.constant dense<0.000000e+00> : vector<8x512xf32>
    %271 = tpu.matmul %270, %4, %cst_115 {dimension_numbers = #tpu.dot_dimension_numbers<[1], [0], [0], [1], [0, 0, 1, 1], [], []>} : vector<8x128xbf16>, vector<128x512xbf16>, vector<8x512xf32> -> vector<8x512xf32>
    %272 = arith.addf %269, %271 : vector<8x512xf32>
    %273 = vector.broadcast %5 : vector<1x512xf32> to vector<8x512xf32>
    %274 = arith.addf %272, %273 : vector<8x512xf32>
    %275 = vector.extract_strided_slice %274 {offsets = [0, 0], sizes = [8, 128], strides = [1, 1]} : vector<8x512xf32> to vector<8x128xf32>
    %276 = arith.negf %275 : vector<8x128xf32>
    %277 = math.exp %276 : vector<8x128xf32>
    %cst_116 = arith.constant 1.000000e+00 : f32
    %278 = vector.broadcast %cst_116 : f32 to vector<8x128xf32>
    %279 = arith.addf %278, %277 : vector<8x128xf32>
    %280 = arith.divf %278, %279 : vector<8x128xf32>
    %281 = vector.extract_strided_slice %274 {offsets = [0, 128], sizes = [8, 128], strides = [1, 1]} : vector<8x512xf32> to vector<8x128xf32>
    %282 = arith.negf %281 : vector<8x128xf32>
    %283 = math.exp %282 : vector<8x128xf32>
    %cst_117 = arith.constant 1.000000e+00 : f32
    %284 = vector.broadcast %cst_117 : f32 to vector<8x128xf32>
    %285 = arith.addf %284, %283 : vector<8x128xf32>
    %286 = arith.divf %284, %285 : vector<8x128xf32>
    %287 = vector.extract_strided_slice %274 {offsets = [0, 256], sizes = [8, 128], strides = [1, 1]} : vector<8x512xf32> to vector<8x128xf32>
    %288 = math.tanh %287 : vector<8x128xf32>
    %289 = vector.extract_strided_slice %274 {offsets = [0, 384], sizes = [8, 128], strides = [1, 1]} : vector<8x512xf32> to vector<8x128xf32>
    %290 = arith.negf %289 : vector<8x128xf32>
    %291 = math.exp %290 : vector<8x128xf32>
    %cst_118 = arith.constant 1.000000e+00 : f32
    %292 = vector.broadcast %cst_118 : f32 to vector<8x128xf32>
    %293 = arith.addf %292, %291 : vector<8x128xf32>
    %294 = arith.divf %292, %293 : vector<8x128xf32>
    %295 = arith.mulf %286, %268 : vector<8x128xf32>
    %296 = arith.mulf %280, %288 : vector<8x128xf32>
    %297 = arith.addf %295, %296 : vector<8x128xf32>
    %298 = math.tanh %297 : vector<8x128xf32>
    %299 = arith.mulf %294, %298 : vector<8x128xf32>
    %c0_119 = arith.constant 0 : index
    %c0_120 = arith.constant 0 : index
    %300 = vector.load %arg8[%c0_119, %c0_120] : memref<8x128xf32, #tpu.memory_space<vmem>>, vector<8x128xf32>
    tpu.vector_store %arg8[%c0_119, %c0_120], %297 {strides = array<i32>} : memref<8x128xf32, #tpu.memory_space<vmem>>, vector<8x128xf32>,
    %c0_121 = arith.constant 0 : index
    %c0_122 = arith.constant 0 : index
    %301 = vector.load %arg7[%c0_121, %c0_122] : memref<8x128xf32, #tpu.memory_space<vmem>>, vector<8x128xf32>
    tpu.vector_store %arg7[%c0_121, %c0_122], %299 {strides = array<i32>} : memref<8x128xf32, #tpu.memory_space<vmem>>, vector<8x128xf32>,
    %302 = arith.truncf %299 : vector<8x128xf32> to vector<8x128xbf16>
    %303 = arith.index_cast %c6_i32 : i32 to index
    %c0_123 = arith.constant 0 : index
    %c0_124 = arith.constant 0 : index
    %304 = vector.load %arg6[%303, %c0_123, %c0_124] : memref<8x8x128xbf16, #tpu.memory_space<vmem>>, vector<1x8x128xbf16>
    %305 = vector.shape_cast %304 : vector<1x8x128xbf16> to vector<8x128xbf16>
    %306 = vector.shape_cast %302 : vector<8x128xbf16> to vector<1x8x128xbf16>
    tpu.vector_store %arg6[%303, %c0_123, %c0_124], %306 {strides = array<i32>} : memref<8x8x128xbf16, #tpu.memory_space<vmem>>, vector<1x8x128xbf16>,
    %c7_i32 = arith.constant 7 : i32
    %307 = arith.index_cast %c7_i32 : i32 to index
    %c0_125 = arith.constant 0 : index
    %c0_126 = arith.constant 0 : index
    %308 = vector.load %arg2[%307, %c0_125, %c0_126] : memref<8x8x32xbf16, #tpu.memory_space<vmem>>, vector<1x8x32xbf16>
    %309 = vector.shape_cast %308 : vector<1x8x32xbf16> to vector<8x32xbf16>
    %c0_127 = arith.constant 0 : index
    %c0_128 = arith.constant 0 : index
    %310 = vector.load %arg7[%c0_127, %c0_128] : memref<8x128xf32, #tpu.memory_space<vmem>>, vector<8x128xf32>
    %c0_129 = arith.constant 0 : index
    %c0_130 = arith.constant 0 : index
    %311 = vector.load %arg8[%c0_129, %c0_130] : memref<8x128xf32, #tpu.memory_space<vmem>>, vector<8x128xf32>
    %cst_131 = arith.constant dense<0.000000e+00> : vector<8x512xf32>
    %312 = tpu.matmul %309, %3, %cst_131 {dimension_numbers = #tpu.dot_dimension_numbers<[1], [0], [0], [1], [0, 0, 1, 1], [], []>} : vector<8x32xbf16>, vector<32x512xbf16>, vector<8x512xf32> -> vector<8x512xf32>
    %313 = arith.truncf %310 : vector<8x128xf32> to vector<8x128xbf16>
    %cst_132 = arith.constant dense<0.000000e+00> : vector<8x512xf32>
    %314 = tpu.matmul %313, %4, %cst_132 {dimension_numbers = #tpu.dot_dimension_numbers<[1], [0], [0], [1], [0, 0, 1, 1], [], []>} : vector<8x128xbf16>, vector<128x512xbf16>, vector<8x512xf32> -> vector<8x512xf32>
    %315 = arith.addf %312, %314 : vector<8x512xf32>
    %316 = vector.broadcast %5 : vector<1x512xf32> to vector<8x512xf32>
    %317 = arith.addf %315, %316 : vector<8x512xf32>
    %318 = vector.extract_strided_slice %317 {offsets = [0, 0], sizes = [8, 128], strides = [1, 1]} : vector<8x512xf32> to vector<8x128xf32>
    %319 = arith.negf %318 : vector<8x128xf32>
    %320 = math.exp %319 : vector<8x128xf32>
    %cst_133 = arith.constant 1.000000e+00 : f32
    %321 = vector.broadcast %cst_133 : f32 to vector<8x128xf32>
    %322 = arith.addf %321, %320 : vector<8x128xf32>
    %323 = arith.divf %321, %322 : vector<8x128xf32>
    %324 = vector.extract_strided_slice %317 {offsets = [0, 128], sizes = [8, 128], strides = [1, 1]} : vector<8x512xf32> to vector<8x128xf32>
    %325 = arith.negf %324 : vector<8x128xf32>
    %326 = math.exp %325 : vector<8x128xf32>
    %cst_134 = arith.constant 1.000000e+00 : f32
    %327 = vector.broadcast %cst_134 : f32 to vector<8x128xf32>
    %328 = arith.addf %327, %326 : vector<8x128xf32>
    %329 = arith.divf %327, %328 : vector<8x128xf32>
    %330 = vector.extract_strided_slice %317 {offsets = [0, 256], sizes = [8, 128], strides = [1, 1]} : vector<8x512xf32> to vector<8x128xf32>
    %331 = math.tanh %330 : vector<8x128xf32>
    %332 = vector.extract_strided_slice %317 {offsets = [0, 384], sizes = [8, 128], strides = [1, 1]} : vector<8x512xf32> to vector<8x128xf32>
    %333 = arith.negf %332 : vector<8x128xf32>
    %334 = math.exp %333 : vector<8x128xf32>
    %cst_135 = arith.constant 1.000000e+00 : f32
    %335 = vector.broadcast %cst_135 : f32 to vector<8x128xf32>
    %336 = arith.addf %335, %334 : vector<8x128xf32>
    %337 = arith.divf %335, %336 : vector<8x128xf32>
    %338 = arith.mulf %329, %311 : vector<8x128xf32>
    %339 = arith.mulf %323, %331 : vector<8x128xf32>
    %340 = arith.addf %338, %339 : vector<8x128xf32>
    %341 = math.tanh %340 : vector<8x128xf32>
    %342 = arith.mulf %337, %341 : vector<8x128xf32>
    %c0_136 = arith.constant 0 : index
    %c0_137 = arith.constant 0 : index
    %343 = vector.load %arg8[%c0_136, %c0_137] : memref<8x128xf32, #tpu.memory_space<vmem>>, vector<8x128xf32>
    tpu.vector_store %arg8[%c0_136, %c0_137], %340 {strides = array<i32>} : memref<8x128xf32, #tpu.memory_space<vmem>>, vector<8x128xf32>,
    %c0_138 = arith.constant 0 : index
    %c0_139 = arith.constant 0 : index
    %344 = vector.load %arg7[%c0_138, %c0_139] : memref<8x128xf32, #tpu.memory_space<vmem>>, vector<8x128xf32>
    tpu.vector_store %arg7[%c0_138, %c0_139], %342 {strides = array<i32>} : memref<8x128xf32, #tpu.memory_space<vmem>>, vector<8x128xf32>,
    %345 = arith.truncf %342 : vector<8x128xf32> to vector<8x128xbf16>
    %346 = arith.index_cast %c7_i32 : i32 to index
    %c0_140 = arith.constant 0 : index
    %c0_141 = arith.constant 0 : index
    %347 = vector.load %arg6[%346, %c0_140, %c0_141] : memref<8x8x128xbf16, #tpu.memory_space<vmem>>, vector<1x8x128xbf16>
    %348 = vector.shape_cast %347 : vector<1x8x128xbf16> to vector<8x128xbf16>
    %349 = vector.shape_cast %345 : vector<8x128xbf16> to vector<1x8x128xbf16>
    tpu.vector_store %arg6[%346, %c0_140, %c0_141], %349 {strides = array<i32>} : memref<8x8x128xbf16, #tpu.memory_space<vmem>>, vector<1x8x128xbf16>,
    %c8_i32 = arith.constant 8 : i32
    return
  }
  func.func @transform_0(%arg0: i32, %arg1: i32) -> (i32, i32, i32) {
    %c0_i32 = arith.constant 0 : i32
    %c0_i32_0 = arith.constant 0 : i32
    return %arg1, %arg0, %c0_i32 : i32, i32, i32
  }
  func.func @transform_1(%arg0: i32, %arg1: i32) -> (i32, i32) {
    %c0_i32 = arith.constant 0 : i32
    %c0_i32_0 = arith.constant 0 : i32
    %c0_i32_1 = arith.constant 0 : i32
    return %c0_i32, %c0_i32_0 : i32, i32
  }
  func.func @transform_2(%arg0: i32, %arg1: i32) -> (i32, i32) {
    %c0_i32 = arith.constant 0 : i32
    %c0_i32_0 = arith.constant 0 : i32
    %c0_i32_1 = arith.constant 0 : i32
    return %c0_i32, %c0_i32_0 : i32, i32
  }
  func.func @transform_3(%arg0: i32, %arg1: i32) -> (i32, i32) {
    %c0_i32 = arith.constant 0 : i32
    %c0_i32_0 = arith.constant 0 : i32
    %c0_i32_1 = arith.constant 0 : i32
    return %c0_i32, %c0_i32_0 : i32, i32
  }
  func.func @transform_4(%arg0: i32, %arg1: i32) -> (i32, i32, i32) {
    %c0_i32 = arith.constant 0 : i32
    %c0_i32_0 = arith.constant 0 : i32
    return %arg1, %arg0, %c0_i32 : i32, i32, i32
  }
}

</mosaic_0001>

<llo_original>
// kernel: tpu_custom_call.1
$region0: #{tpu_custom_call.1}
  #allocation0 [shape = 'u32[]', space=smem, size = 0x4, offset = 0x4, fixed_abs, tag = 'smem constant byte address 0x4 - core index']
  #allocation1 [shape = 'u32[144,128]{1,0:T(1,128)}', space=vmem, size = 0x12000, scoped, tag = 'internal scratch']
  #allocation2 [shape = 'f32[8,128]{1,0:T(8,128)}', space=vmem, size = 0x1000, scoped, tag = 'scratch operand']
  #allocation3 [shape = 'f32[8,128]{1,0:T(8,128)}', space=vmem, size = 0x1000, scoped, tag = 'scratch operand']
  %s0 = inlined_call_operand.hbm [shape: bf16[8,8,32], index: 0, kind: input, shape index: {}]
  %s1 = inlined_call_operand.hbm [shape: bf16[32,512], index: 1, kind: input, shape index: {}]
  %s2 = inlined_call_operand.hbm [shape: bf16[128,512], index: 2, kind: input, shape index: {}]
  %s3 = inlined_call_operand.vmem [shape: f32[1,512], index: 3, kind: input, shape index: {}]
  %s4 = inlined_call_operand.hbm [shape: bf16[8,8,128], index: 4, kind: output, shape index: {}]
  %s5 = sld [smem:[#allocation0]]
  $region42: #{tpu_custom_call.1} parent=0
    _
  %s7 = ssub.s32 1, %s5
  %s8 = scalar_select 0, %s7, %s5
  $region1: #{tpu_custom_call.1} parent=0
    #allocation4 [shape = 'u8[16384]{0}', space=vmem, size = 0x4000, scoped, tag = 'input window, operand 0, single buffered']
    #allocation5 [shape = 's32[1]{0}', space=sflag, size = 0x4, scoped, tag = 'scoped memory for tpu_custom_call.1']
    #allocation6 [shape = 's32[1]{0}', space=sflag, size = 0x4, scoped, tag = 'scoped memory for tpu_custom_call.1']
    #allocation7 [shape = 'u8[32768]{0}', space=vmem, size = 0x8000, scoped, tag = 'input window, operand 1, single buffered']
    #allocation8 [shape = 's32[1]{0}', space=sflag, size = 0x4, scoped, tag = 'scoped memory for tpu_custom_call.1']
    #allocation9 [shape = 'u8[131072]{0}', space=vmem, size = 0x20000, scoped, tag = 'input window, operand 2, single buffered']
    #allocation10 [shape = 'u8[16384]{0}', space=vmem, size = 0x4000, scoped, tag = 'output window, operand 0, single buffered']
    %9 = vsyncpa [#allocation5], 0
    %10 = vsyncpa [#allocation8], 0
    %11 = vsyncpa [#allocation6], 0
    // Predicated region
    $region2: #{tpu_custom_call.1} parent=1 // pred_check
      _
    $region3: #{tpu_custom_call.1} parent=1 // pred_check_branch
      %13 = sbr.rel (0) target = $region5
    $region4: #{tpu_custom_call.1} parent=1 // pred_region
      %s15 = ssub.s32 512, 512
      %16 = vsyncadd [#allocation5], %s15
      %s17 = sshll.u32 [#allocation4], 4
      %s18 = int_to_ptr.vmem [resolvable:$true] %s17
      %23 = dma.hbm_to_vmem [thread:$0]  %s0, 512, %s18, [#allocation5], 64, 64, 4
    $region5: #{tpu_custom_call.1} parent=1 // pred_fallthru
      _
    // Predicated region
    $region6: #{tpu_custom_call.1} parent=1 // pred_check
      _
    $region7: #{tpu_custom_call.1} parent=1 // pred_check_branch
      %25 = sbr.rel (0) target = $region9
    $region8: #{tpu_custom_call.1} parent=1 // pred_region
      %s27 = ssub.s32 1024, 1024
      %28 = vsyncadd [#allocation8], %s27
      %s29 = sshll.u32 [#allocation7], 4
      %s30 = int_to_ptr.vmem [resolvable:$true] %s29
      %35 = dma.hbm_to_vmem [thread:$0]  %s1, 1024, %s30, [#allocation8], 256, 256, 16
    $region9: #{tpu_custom_call.1} parent=1 // pred_fallthru
      _
    // Predicated region
    $region10: #{tpu_custom_call.1} parent=1 // pred_check
      _
    $region11: #{tpu_custom_call.1} parent=1 // pred_check_branch
      %37 = sbr.rel (0) target = $region13
    $region12: #{tpu_custom_call.1} parent=1 // pred_region
      %s39 = ssub.s32 4096, 4096
      %40 = vsyncadd [#allocation8], %s39
      %s41 = sshll.u32 [#allocation9], 4
      %s42 = int_to_ptr.vmem [resolvable:$true] %s41
      %47 = dma.hbm_to_vmem [thread:$0]  %s2, 4096, %s42, [#allocation8], 256, 256, 16
    $region13: #{tpu_custom_call.1} parent=1 // pred_fallthru
      _
    // Predicated region
    $region14: #{tpu_custom_call.1} parent=1 // pred_check
      _
    $region15: #{tpu_custom_call.1} parent=1 // pred_check_branch
      %49 = sbr.rel (0) target = $region17
    $region16: #{tpu_custom_call.1} parent=1 // pred_region
      _
    $region17: #{tpu_custom_call.1} parent=1 // pred_fallthru
      _
    // Predicated region
    $region18: #{tpu_custom_call.1} parent=1 // pred_check
      _
    $region19: #{tpu_custom_call.1} parent=1 // pred_check_branch
      %51 = sbr.rel (0) target = $region21
    $region20: #{tpu_custom_call.1} parent=1 // pred_region
      %52 = dma.done [#allocation5], 512
    $region21: #{tpu_custom_call.1} parent=1 // pred_fallthru
      _
    // Predicated region
    $region22: #{tpu_custom_call.1} parent=1 // pred_check
      _
    $region23: #{tpu_custom_call.1} parent=1 // pred_check_branch
      %54 = sbr.rel (0) target = $region25
    $region24: #{tpu_custom_call.1} parent=1 // pred_region
      %55 = dma.done [#allocation8], 1024
    $region25: #{tpu_custom_call.1} parent=1 // pred_fallthru
      _
    // Predicated region
    $region26: #{tpu_custom_call.1} parent=1 // pred_check
      _
    $region27: #{tpu_custom_call.1} parent=1 // pred_check_branch
      %57 = sbr.rel (0) target = $region29
    $region28: #{tpu_custom_call.1} parent=1 // pred_region
      %58 = dma.done [#allocation8], 4096
    $region29: #{tpu_custom_call.1} parent=1 // pred_fallthru
      _
    %p60 = scmp.eq.s32.totalorder 0, 0
    // Predicated region
    $region30: #{tpu_custom_call.1} parent=1 // pred_check
      %p61 = pneg %p60
    $region31: #{tpu_custom_call.1} parent=1 // pred_check_branch
      %63 = sbr.rel (%p61) target = $region33
    $region32: #{tpu_custom_call.1} parent=1 // pred_region
      %64 = vst [vmem:[#allocation2] sm:$0xff] 0.0
      %65 = vst [vmem:[#allocation3] sm:$0xff] 0.0
    $region33: #{tpu_custom_call.1} parent=1 // pred_fallthru
      _
    %v66 = vld [vmem:[#allocation7] sm:$0xff]
    %v67 = vld [vmem:[#allocation7 + $0x8] sm:$0xff]
    %v68 = vld [vmem:[#allocation7 + $0x10] sm:$0xff]
    %v69 = vld [vmem:[#allocation7 + $0x18] sm:$0xff]
    %v70 = vld [vmem:[#allocation7 + $0x20] sm:$0xff]
    %v71 = vld [vmem:[#allocation7 + $0x28] sm:$0xff]
    %v72 = vld [vmem:[#allocation7 + $0x30] sm:$0xff]
    %v73 = vld [vmem:[#allocation7 + $0x38] sm:$0xff]
    %v74 = vld [vmem:[#allocation9] sm:$0xff]
    %v75 = vld [vmem:[#allocation9 + $0x8] sm:$0xff]
    %v76 = vld [vmem:[#allocation9 + $0x10] sm:$0xff]
    %v77 = vld [vmem:[#allocation9 + $0x18] sm:$0xff]
    %v78 = vld [vmem:[#allocation9 + $0x20] sm:$0xff]
    %v79 = vld [vmem:[#allocation9 + $0x28] sm:$0xff]
    %v80 = vld [vmem:[#allocation9 + $0x30] sm:$0xff]
    %v81 = vld [vmem:[#allocation9 + $0x38] sm:$0xff]
    %v82 = vld [vmem:[#allocation9 + $0x40] sm:$0xff]
    %v83 = vld [vmem:[#allocation9 + $0x48] sm:$0xff]
    %v84 = vld [vmem:[#allocation9 + $0x50] sm:$0xff]
    %v85 = vld [vmem:[#allocation9 + $0x58] sm:$0xff]
    %v86 = vld [vmem:[#allocation9 + $0x60] sm:$0xff]
    %v87 = vld [vmem:[#allocation9 + $0x68] sm:$0xff]
    %v88 = vld [vmem:[#allocation9 + $0x70] sm:$0xff]
    %v89 = vld [vmem:[#allocation9 + $0x78] sm:$0xff]
    %v90 = vld [vmem:[#allocation9 + $0x80] sm:$0xff]
    %v91 = vld [vmem:[#allocation9 + $0x88] sm:$0xff]
    %v92 = vld [vmem:[#allocation9 + $0x90] sm:$0xff]
    %v93 = vld [vmem:[#allocation9 + $0x98] sm:$0xff]
    %v94 = vld [vmem:[#allocation9 + $0xa0] sm:$0xff]
    %v95 = vld [vmem:[#allocation9 + $0xa8] sm:$0xff]
    %v96 = vld [vmem:[#allocation9 + $0xb0] sm:$0xff]
    %v97 = vld [vmem:[#allocation9 + $0xb8] sm:$0xff]
    %v98 = vld [vmem:[#allocation9 + $0xc0] sm:$0xff]
    %v99 = vld [vmem:[#allocation9 + $0xc8] sm:$0xff]
    %v100 = vld [vmem:[#allocation9 + $0xd0] sm:$0xff]
    %v101 = vld [vmem:[#allocation9 + $0xd8] sm:$0xff]
    %v102 = vld [vmem:[#allocation9 + $0xe0] sm:$0xff]
    %v103 = vld [vmem:[#allocation9 + $0xe8] sm:$0xff]
    %v104 = vld [vmem:[#allocation9 + $0xf0] sm:$0xff]
    %v105 = vld [vmem:[#allocation9 + $0xf8] sm:$0xff]
    %v106 = vld [vmem:[%s3] sm:$0xf]
    %v107 = vld [vmem:[#allocation4] sm:$0xf]
    %v108 = vld [vmem:[#allocation2] sm:$0xff]
    %v109 = vld [vmem:[#allocation3] sm:$0xff]
    %v110 = vpack.c.bf16 %v108, %v108
    %v143 = vunpack.c.l.b16 %v74
    %v144 = vunpack.c.h.b16 %v74
    %v145 = vunpack.c.l.b16 %v75
    %v146 = vunpack.c.h.b16 %v75
    %v147 = vunpack.c.l.b16 %v76
    %v148 = vunpack.c.h.b16 %v76
    %v149 = vunpack.c.l.b16 %v77
    %v150 = vunpack.c.h.b16 %v77
    %v151 = vunpack.c.l.b16 %v78
    %v152 = vunpack.c.h.b16 %v78
    %v153 = vunpack.c.l.b16 %v79
    %v154 = vunpack.c.h.b16 %v79
    %v155 = vunpack.c.l.b16 %v80
    %v156 = vunpack.c.h.b16 %v80
    %v157 = vunpack.c.l.b16 %v81
    %v158 = vunpack.c.h.b16 %v81
    %v159 = vunpack.c.l.b16 %v82
    %v160 = vunpack.c.h.b16 %v82
    %v161 = vunpack.c.l.b16 %v83
    %v162 = vunpack.c.h.b16 %v83
    %v163 = vunpack.c.l.b16 %v84
    %v164 = vunpack.c.h.b16 %v84
    %v165 = vunpack.c.l.b16 %v85
    %v166 = vunpack.c.h.b16 %v85
    %v167 = vunpack.c.l.b16 %v86
    %v168 = vunpack.c.h.b16 %v86
    %v169 = vunpack.c.l.b16 %v87
    %v170 = vunpack.c.h.b16 %v87
    %v171 = vunpack.c.l.b16 %v88
    %v172 = vunpack.c.h.b16 %v88
    %v173 = vunpack.c.l.b16 %v89
    %v174 = vunpack.c.h.b16 %v89
    %v175 = vunpack.c.l.b16 %v90
    %v176 = vunpack.c.h.b16 %v90
    %v177 = vunpack.c.l.b16 %v91
    %v178 = vunpack.c.h.b16 %v91
    %v179 = vunpack.c.l.b16 %v92
    %v180 = vunpack.c.h.b16 %v92
    %v181 = vunpack.c.l.b16 %v93
    %v182 = vunpack.c.h.b16 %v93
    %v183 = vunpack.c.l.b16 %v94
    %v184 = vunpack.c.h.b16 %v94
    %v185 = vunpack.c.l.b16 %v95
    %v186 = vunpack.c.h.b16 %v95
    %v187 = vunpack.c.l.b16 %v96
    %v188 = vunpack.c.h.b16 %v96
    %v189 = vunpack.c.l.b16 %v97
    %v190 = vunpack.c.h.b16 %v97
    %v191 = vunpack.c.l.b16 %v98
    %v192 = vunpack.c.h.b16 %v98
    %v193 = vunpack.c.l.b16 %v99
    %v194 = vunpack.c.h.b16 %v99
    %v195 = vunpack.c.l.b16 %v100
    %v196 = vunpack.c.h.b16 %v100
    %v197 = vunpack.c.l.b16 %v101
    %v198 = vunpack.c.h.b16 %v101
    %v199 = vunpack.c.l.b16 %v102
    %v200 = vunpack.c.h.b16 %v102
    %v201 = vunpack.c.l.b16 %v103
    %v202 = vunpack.c.h.b16 %v103
    %v203 = vunpack.c.l.b16 %v104
    %v204 = vunpack.c.h.b16 %v104
    %v205 = vunpack.c.l.b16 %v105
    %v206 = vunpack.c.h.b16 %v105
    %v207 = vpack.c.b16 %v147, %v143
    %v208 = vpack.c.b16 %v148, %v144
    %v209 = vpack.c.b16 %v149, %v145
    %v210 = vpack.c.b16 %v150, %v146
    %v211 = vpack.c.b16 %v155, %v151
    %v212 = vpack.c.b16 %v156, %v152
    %v213 = vpack.c.b16 %v157, %v153
    %v214 = vpack.c.b16 %v158, %v154
    %v215 = vpack.c.b16 %v163, %v159
    %v216 = vpack.c.b16 %v164, %v160
    %v217 = vpack.c.b16 %v165, %v161
    %v218 = vpack.c.b16 %v166, %v162
    %v219 = vpack.c.b16 %v171, %v167
    %v220 = vpack.c.b16 %v172, %v168
    %v221 = vpack.c.b16 %v173, %v169
    %v222 = vpack.c.b16 %v174, %v170
    %v223 = vpack.c.b16 %v179, %v175
    %v224 = vpack.c.b16 %v180, %v176
    %v225 = vpack.c.b16 %v181, %v177
    %v226 = vpack.c.b16 %v182, %v178
    %v227 = vpack.c.b16 %v187, %v183
    %v228 = vpack.c.b16 %v188, %v184
    %v229 = vpack.c.b16 %v189, %v185
    %v230 = vpack.c.b16 %v190, %v186
    %v231 = vpack.c.b16 %v195, %v191
    %v232 = vpack.c.b16 %v196, %v192
    %v233 = vpack.c.b16 %v197, %v193
    %v234 = vpack.c.b16 %v198, %v194
    %v235 = vpack.c.b16 %v203, %v199
    %v236 = vpack.c.b16 %v204, %v200
    %v237 = vpack.c.b16 %v205, %v201
    %v238 = vpack.c.b16 %v206, %v202
    %271 = vmatprep.subr.bf16.mxu0 %v208
    %272 = vmatpush1.bf16.msra.mxu0 %v207
    %273 = vmatprep.subr.bf16.mxu0 %v212
    %274 = vmatpush1.bf16.msra.mxu0 %v211
    %275 = vmatprep.subr.bf16.mxu0 %v216
    %276 = vmatpush1.bf16.msra.mxu0 %v215
    %277 = vmatprep.subr.bf16.mxu0 %v220
    %278 = vmatpush1.bf16.msra.mxu0 %v219
    %279 = vmatprep.subr.bf16.mxu0 %v224
    %280 = vmatpush1.bf16.msra.mxu0 %v223
    %281 = vmatprep.subr.bf16.mxu0 %v228
    %282 = vmatpush1.bf16.msra.mxu0 %v227
    %283 = vmatprep.subr.bf16.mxu0 %v232
    %284 = vmatpush1.bf16.msra.mxu0 %v231
    %285 = vmatprep.subr.bf16.mxu0 %v236
    %286 = vmatpush1.bf16.msra.mxu0 %v235
    %287 = vmatprep.subr.bf16.mxu0 0
    %288 = vmatpush1.bf16.msra.mxu0 0
    %289 = vmatprep.subr.bf16.mxu0 0
    %290 = vmatpush1.bf16.msra.mxu0 0
    %291 = vmatprep.subr.bf16.mxu0 0
    %292 = vmatpush1.bf16.msra.mxu0 0
    %293 = vmatprep.subr.bf16.mxu0 0
    %294 = vmatpush1.bf16.msra.mxu0 0
    %295 = vmatprep.subr.bf16.mxu0 0
    %296 = vmatpush1.bf16.msra.mxu0 0
    %297 = vmatprep.subr.bf16.mxu0 0
    %298 = vmatpush1.bf16.msra.mxu0 0
    %299 = vmatprep.subr.bf16.mxu0 0
    %300 = vmatpush1.bf16.msra.mxu0 0
    %301 = vmatprep.subr.bf16.mxu0 0
    %302 = vmatpush1.bf16.msra.mxu0 0
    %303 = vmatprep.mubr.bf16.mxu0 0
    %304 = vmatmul.mubr.bf16.gmra.mrb[0].mxu0 %v110
    %v305 = vpop.f32.mrb[0].mxu0
    %v306 = vadd.f32 0.0, %v305
    %v307 = vpop.f32.mrb[0].mxu0
    %v308 = vadd.f32 0.0, %v307
    %v309 = vpop.f32.mrb[0].mxu0
    %v310 = vpop.f32.mrb[0].mxu0
    %311 = vdwg.mxu0
    %312 = vmatprep.subr.bf16.mxu0 %v210
    %313 = vmatpush1.bf16.msra.mxu0 %v209
    %314 = vmatprep.subr.bf16.mxu0 %v214
    %315 = vmatpush1.bf16.msra.mxu0 %v213
    %316 = vmatprep.subr.bf16.mxu0 %v218
    %317 = vmatpush1.bf16.msra.mxu0 %v217
    %318 = vmatprep.subr.bf16.mxu0 %v222
    %319 = vmatpush1.bf16.msra.mxu0 %v221
    %320 = vmatprep.subr.bf16.mxu0 %v226
    %321 = vmatpush1.bf16.msra.mxu0 %v225
    %322 = vmatprep.subr.bf16.mxu0 %v230
    %323 = vmatpush1.bf16.msra.mxu0 %v229
    %324 = vmatprep.subr.bf16.mxu0 %v234
    %325 = vmatpush1.bf16.msra.mxu0 %v233
    %326 = vmatprep.subr.bf16.mxu0 %v238
    %327 = vmatpush1.bf16.msra.mxu0 %v237
    %328 = vmatprep.subr.bf16.mxu0 0
    %329 = vmatpush1.bf16.msra.mxu0 0
    %330 = vmatprep.subr.bf16.mxu0 0
    %331 = vmatpush1.bf16.msra.mxu0 0
    %332 = vmatprep.subr.bf16.mxu0 0
    %333 = vmatpush1.bf16.msra.mxu0 0
    %334 = vmatprep.subr.bf16.mxu0 0
    %335 = vmatpush1.bf16.msra.mxu0 0
    %336 = vmatprep.subr.bf16.mxu0 0
    %337 = vmatpush1.bf16.msra.mxu0 0
    %338 = vmatprep.subr.bf16.mxu0 0
    %339 = vmatpush1.bf16.msra.mxu0 0
    %340 = vmatprep.subr.bf16.mxu0 0
    %341 = vmatpush1.bf16.msra.mxu0 0
    %342 = vmatprep.subr.bf16.mxu0 0
    %343 = vmatpush1.bf16.msra.mxu0 0
    %344 = vmatprep.mubr.bf16.mxu0 0
    %345 = vmatmul.mubr.bf16.gmra.mrb[0].mxu0 %v110
    %v346 = vpop.f32.mrb[0].mxu0
    %v347 = vadd.f32 0.0, %v346
    %v348 = vpop.f32.mrb[0].mxu0
    %v349 = vadd.f32 0.0, %v348
    %v350 = vpop.f32.mrb[0].mxu0
    %v351 = vpop.f32.mrb[0].mxu0
    %352 = vdwg.mxu0
    %v361 = vunpack.c.l.b16 %v66
    %v362 = vunpack.c.h.b16 %v66
    %v363 = vunpack.c.l.b16 %v67
    %v364 = vunpack.c.h.b16 %v67
    %v365 = vunpack.c.l.b16 %v68
    %v366 = vunpack.c.h.b16 %v68
    %v367 = vunpack.c.l.b16 %v69
    %v368 = vunpack.c.h.b16 %v69
    %v369 = vunpack.c.l.b16 %v70
    %v370 = vunpack.c.h.b16 %v70
    %v371 = vunpack.c.l.b16 %v71
    %v372 = vunpack.c.h.b16 %v71
    %v373 = vunpack.c.l.b16 %v72
    %v374 = vunpack.c.h.b16 %v72
    %v375 = vunpack.c.l.b16 %v73
    %v376 = vunpack.c.h.b16 %v73
    %v377 = vpack.c.b16 %v365, %v361
    %v378 = vpack.c.b16 %v366, %v362
    %v379 = vpack.c.b16 %v367, %v363
    %v380 = vpack.c.b16 %v368, %v364
    %v381 = vpack.c.b16 %v373, %v369
    %v382 = vpack.c.b16 %v374, %v370
    %v383 = vpack.c.b16 %v375, %v371
    %v384 = vpack.c.b16 %v376, %v372
    %vm393 = vcmask 261120
    %v395 = vsel %vm393, %v107, 0
    %397 = vmatprep.subr.bf16.mxu0 %v378
    %398 = vmatpush1.bf16.msra.mxu0 %v377
    %399 = vmatprep.subr.bf16.mxu0 %v382
    %400 = vmatpush1.bf16.msra.mxu0 %v381
    %401 = vmatprep.subr.bf16.mxu0 0
    %402 = vmatpush1.bf16.msra.mxu0 0
    %403 = vmatprep.subr.bf16.mxu0 0
    %404 = vmatpush1.bf16.msra.mxu0 0
    %405 = vmatprep.subr.bf16.mxu0 0
    %406 = vmatpush1.bf16.msra.mxu0 0
    %407 = vmatprep.subr.bf16.mxu0 0
    %408 = vmatpush1.bf16.msra.mxu0 0
    %409 = vmatprep.subr.bf16.mxu0 0
    %410 = vmatpush1.bf16.msra.mxu0 0
    %411 = vmatprep.subr.bf16.mxu0 0
    %412 = vmatpush1.bf16.msra.mxu0 0
    %413 = vmatprep.subr.bf16.mxu0 0
    %414 = vmatpush1.bf16.msra.mxu0 0
    %415 = vmatprep.subr.bf16.mxu0 0
    %416 = vmatpush1.bf16.msra.mxu0 0
    %417 = vmatprep.subr.bf16.mxu0 0
    %418 = vmatpush1.bf16.msra.mxu0 0
    %419 = vmatprep.subr.bf16.mxu0 0
    %420 = vmatpush1.bf16.msra.mxu0 0
    %421 = vmatprep.subr.bf16.mxu0 0
    %422 = vmatpush1.bf16.msra.mxu0 0
    %423 = vmatprep.subr.bf16.mxu0 0
    %424 = vmatpush1.bf16.msra.mxu0 0
    %425 = vmatprep.subr.bf16.mxu0 0
    %426 = vmatpush1.bf16.msra.mxu0 0
    %427 = vmatprep.subr.bf16.mxu0 0
    %428 = vmatpush1.bf16.msra.mxu0 0
    %429 = vmatprep.mubr.bf16.mxu0 0
    %430 = vmatmul.mubr.bf16.gmra.mrb[0].mxu0 %v395
    %v431 = vpop.f32.mrb[0].mxu0
    %v432 = vadd.f32 %v306, %v431
    %v433 = vpop.f32.mrb[0].mxu0
    %v434 = vadd.f32 %v308, %v433
    %v435 = vpop.f32.mrb[0].mxu0
    %v436 = vpop.f32.mrb[0].mxu0
    %437 = vdwg.mxu0
    %438 = vmatprep.subr.bf16.mxu0 %v380
    %439 = vmatpush1.bf16.msra.mxu0 %v379
    %440 = vmatprep.subr.bf16.mxu0 %v384
    %441 = vmatpush1.bf16.msra.mxu0 %v383
    %442 = vmatprep.subr.bf16.mxu0 0
    %443 = vmatpush1.bf16.msra.mxu0 0
    %444 = vmatprep.subr.bf16.mxu0 0
    %445 = vmatpush1.bf16.msra.mxu0 0
    %446 = vmatprep.subr.bf16.mxu0 0
    %447 = vmatpush1.bf16.msra.mxu0 0
    %448 = vmatprep.subr.bf16.mxu0 0
    %449 = vmatpush1.bf16.msra.mxu0 0
    %450 = vmatprep.subr.bf16.mxu0 0
    %451 = vmatpush1.bf16.msra.mxu0 0
    %452 = vmatprep.subr.bf16.mxu0 0
    %453 = vmatpush1.bf16.msra.mxu0 0
    %454 = vmatprep.subr.bf16.mxu0 0
    %455 = vmatpush1.bf16.msra.mxu0 0
    %456 = vmatprep.subr.bf16.mxu0 0
    %457 = vmatpush1.bf16.msra.mxu0 0
    %458 = vmatprep.subr.bf16.mxu0 0
    %459 = vmatpush1.bf16.msra.mxu0 0
    %460 = vmatprep.subr.bf16.mxu0 0
    %461 = vmatpush1.bf16.msra.mxu0 0
    %462 = vmatprep.subr.bf16.mxu0 0
    %463 = vmatpush1.bf16.msra.mxu0 0
    %464 = vmatprep.subr.bf16.mxu0 0
    %465 = vmatpush1.bf16.msra.mxu0 0
    %466 = vmatprep.subr.bf16.mxu0 0
    %467 = vmatpush1.bf16.msra.mxu0 0
    %468 = vmatprep.subr.bf16.mxu0 0
    %469 = vmatpush1.bf16.msra.mxu0 0
    %470 = vmatprep.mubr.bf16.mxu0 0
    %471 = vmatmul.mubr.bf16.gmra.mrb[0].mxu0 %v395
    %v472 = vpop.f32.mrb[0].mxu0
    %v473 = vadd.f32 %v347, %v472
    %v474 = vpop.f32.mrb[0].mxu0
    %v475 = vadd.f32 %v349, %v474
    %v476 = vpop.f32.mrb[0].mxu0
    %v477 = vpop.f32.mrb[0].mxu0
    %478 = vdwg.mxu0
    %v480 = vlaneseq
    %v481 = vshrl.u32 %v480, 7
    %v482 = vsub.s32 0, %v481
    %v483 = vrot.slane %v106, %v482
    %v484 = vlaneseq
    %v485 = vshrl.u32 %v484, 7
    %v486 = vsub.s32 1, %v485
    %v487 = vrot.slane %v106, %v486
    %v488 = vlaneseq
    %v489 = vshrl.u32 %v488, 7
    %v490 = vsub.s32 2, %v489
    %v491 = vrot.slane %v106, %v490
    %v492 = vlaneseq
    %v493 = vshrl.u32 %v492, 7
    %v494 = vsub.s32 3, %v493
    %v495 = vrot.slane %v106, %v494
    %v500 = vadd.f32 %v432, %v483
    %v501 = vadd.f32 %v434, %v487
    %v502 = vadd.f32 %v473, %v491
    %v503 = vadd.f32 %v475, %v495
    %v504 = vxor.u32 %v500, 2147483648
    %v505 = vmul.f32 %v504, 1.442695
    %v506 = vpow.pop %v505
    %v507 = vadd.f32 %v506, 1.0
    %v508 = vrcp.pop %v507
    %v509 = vmul.f32 1.0, %v508
    %v510 = vxor.u32 %v501, 2147483648
    %v511 = vmul.f32 %v510, 1.442695
    %v512 = vpow.pop %v511
    %v513 = vadd.f32 %v512, 1.0
    %v514 = vrcp.pop %v513
    %v515 = vmul.f32 1.0, %v514
    %v516 = vtanh.pop %v502
    %v517 = vxor.u32 %v503, 2147483648
    %v518 = vmul.f32 %v517, 1.442695
    %v519 = vpow.pop %v518
    %v520 = vadd.f32 %v519, 1.0
    %v521 = vrcp.pop %v520
    %v522 = vmul.f32 1.0, %v521
    %v523 = vmul.f32 %v515, %v109
    %v524 = vmul.f32 %v509, %v516
    %v525 = vadd.f32 %v523, %v524
    %v526 = vtanh.pop %v525
    %v527 = vmul.f32 %v522, %v526
    %528 = vst [vmem:[#allocation3] sm:$0xff] %v525
    %529 = vst [vmem:[#allocation2] sm:$0xff] %v527
    %v530 = vpack.c.bf16 %v527, %v527
    %531 = vst [vmem:[#allocation10] sm:$0xf] %v530
    %s532 = scalar_lea.vmem [#allocation4], 4
    %v533 = vld [vmem:[%s532] sm:$0xf]
    %v534 = vld [vmem:[#allocation2] sm:$0xff]
    %v535 = vld [vmem:[#allocation3] sm:$0xff]
    %v536 = vpack.c.bf16 %v534, %v534
    %537 = vmatprep.subr.bf16.mxu0 %v208
    %538 = vmatpush1.bf16.msra.mxu0 %v207
    %539 = vmatprep.subr.bf16.mxu0 %v212
    %540 = vmatpush1.bf16.msra.mxu0 %v211
    %541 = vmatprep.subr.bf16.mxu0 %v216
    %542 = vmatpush1.bf16.msra.mxu0 %v215
    %543 = vmatprep.subr.bf16.mxu0 %v220
    %544 = vmatpush1.bf16.msra.mxu0 %v219
    %545 = vmatprep.subr.bf16.mxu0 %v224
    %546 = vmatpush1.bf16.msra.mxu0 %v223
    %547 = vmatprep.subr.bf16.mxu0 %v228
    %548 = vmatpush1.bf16.msra.mxu0 %v227
    %549 = vmatprep.subr.bf16.mxu0 %v232
    %550 = vmatpush1.bf16.msra.mxu0 %v231
    %551 = vmatprep.subr.bf16.mxu0 %v236
    %552 = vmatpush1.bf16.msra.mxu0 %v235
    %553 = vmatprep.subr.bf16.mxu0 0
    %554 = vmatpush1.bf16.msra.mxu0 0
    %555 = vmatprep.subr.bf16.mxu0 0
    %556 = vmatpush1.bf16.msra.mxu0 0
    %557 = vmatprep.subr.bf16.mxu0 0
    %558 = vmatpush1.bf16.msra.mxu0 0
    %559 = vmatprep.subr.bf16.mxu0 0
    %560 = vmatpush1.bf16.msra.mxu0 0
    %561 = vmatprep.subr.bf16.mxu0 0
    %562 = vmatpush1.bf16.msra.mxu0 0
    %563 = vmatprep.subr.bf16.mxu0 0
    %564 = vmatpush1.bf16.msra.mxu0 0
    %565 = vmatprep.subr.bf16.mxu0 0
    %566 = vmatpush1.bf16.msra.mxu0 0
    %567 = vmatprep.subr.bf16.mxu0 0
    %568 = vmatpush1.bf16.msra.mxu0 0
    %569 = vmatprep.mubr.bf16.mxu0 0
    %570 = vmatmul.mubr.bf16.gmra.mrb[0].mxu0 %v536
    %v571 = vpop.f32.mrb[0].mxu0
    %v572 = vadd.f32 0.0, %v571
    %v573 = vpop.f32.mrb[0].mxu0
    %v574 = vadd.f32 0.0, %v573
    %v575 = vpop.f32.mrb[0].mxu0
    %v576 = vpop.f32.mrb[0].mxu0
    %577 = vdwg.mxu0
    %578 = vmatprep.subr.bf16.mxu0 %v210
    %579 = vmatpush1.bf16.msra.mxu0 %v209
    %580 = vmatprep.subr.bf16.mxu0 %v214
    %581 = vmatpush1.bf16.msra.mxu0 %v213
    %582 = vmatprep.subr.bf16.mxu0 %v218
    %583 = vmatpush1.bf16.msra.mxu0 %v217
    %584 = vmatprep.subr.bf16.mxu0 %v222
    %585 = vmatpush1.bf16.msra.mxu0 %v221
    %586 = vmatprep.subr.bf16.mxu0 %v226
    %587 = vmatpush1.bf16.msra.mxu0 %v225
    %588 = vmatprep.subr.bf16.mxu0 %v230
    %589 = vmatpush1.bf16.msra.mxu0 %v229
    %590 = vmatprep.subr.bf16.mxu0 %v234
    %591 = vmatpush1.bf16.msra.mxu0 %v233
    %592 = vmatprep.subr.bf16.mxu0 %v238
    %593 = vmatpush1.bf16.msra.mxu0 %v237
    %594 = vmatprep.subr.bf16.mxu0 0
    %595 = vmatpush1.bf16.msra.mxu0 0
    %596 = vmatprep.subr.bf16.mxu0 0
    %597 = vmatpush1.bf16.msra.mxu0 0
    %598 = vmatprep.subr.bf16.mxu0 0
    %599 = vmatpush1.bf16.msra.mxu0 0
    %600 = vmatprep.subr.bf16.mxu0 0
    %601 = vmatpush1.bf16.msra.mxu0 0
    %602 = vmatprep.subr.bf16.mxu0 0
    %603 = vmatpush1.bf16.msra.mxu0 0
    %604 = vmatprep.subr.bf16.mxu0 0
    %605 = vmatpush1.bf16.msra.mxu0 0
    %606 = vmatprep.subr.bf16.mxu0 0
    %607 = vmatpush1.bf16.msra.mxu0 0
    %608 = vmatprep.subr.bf16.mxu0 0
    %609 = vmatpush1.bf16.msra.mxu0 0
    %610 = vmatprep.mubr.bf16.mxu0 0
    %611 = vmatmul.mubr.bf16.gmra.mrb[0].mxu0 %v536
    %v612 = vpop.f32.mrb[0].mxu0
    %v613 = vadd.f32 0.0, %v612
    %v614 = vpop.f32.mrb[0].mxu0
    %v615 = vadd.f32 0.0, %v614
    %v616 = vpop.f32.mrb[0].mxu0
    %v617 = vpop.f32.mrb[0].mxu0
    %618 = vdwg.mxu0
    %v620 = vsel %vm393, %v533, 0
    %622 = vmatprep.subr.bf16.mxu0 %v378
    %623 = vmatpush1.bf16.msra.mxu0 %v377
    %624 = vmatprep.subr.bf16.mxu0 %v382
    %625 = vmatpush1.bf16.msra.mxu0 %v381
    %626 = vmatprep.subr.bf16.mxu0 0
    %627 = vmatpush1.bf16.msra.mxu0 0
    %628 = vmatprep.subr.bf16.mxu0 0
    %629 = vmatpush1.bf16.msra.mxu0 0
    %630 = vmatprep.subr.bf16.mxu0 0
    %631 = vmatpush1.bf16.msra.mxu0 0
    %632 = vmatprep.subr.bf16.mxu0 0
    %633 = vmatpush1.bf16.msra.mxu0 0
    %634 = vmatprep.subr.bf16.mxu0 0
    %635 = vmatpush1.bf16.msra.mxu0 0
    %636 = vmatprep.subr.bf16.mxu0 0
    %637 = vmatpush1.bf16.msra.mxu0 0
    %638 = vmatprep.subr.bf16.mxu0 0
    %639 = vmatpush1.bf16.msra.mxu0 0
    %640 = vmatprep.subr.bf16.mxu0 0
    %641 = vmatpush1.bf16.msra.mxu0 0
    %642 = vmatprep.subr.bf16.mxu0 0
    %643 = vmatpush1.bf16.msra.mxu0 0
    %644 = vmatprep.subr.bf16.mxu0 0
    %645 = vmatpush1.bf16.msra.mxu0 0
    %646 = vmatprep.subr.bf16.mxu0 0
    %647 = vmatpush1.bf16.msra.mxu0 0
    %648 = vmatprep.subr.bf16.mxu0 0
    %649 = vmatpush1.bf16.msra.mxu0 0
    %650 = vmatprep.subr.bf16.mxu0 0
    %651 = vmatpush1.bf16.msra.mxu0 0
    %652 = vmatprep.subr.bf16.mxu0 0
    %653 = vmatpush1.bf16.msra.mxu0 0
    %654 = vmatprep.mubr.bf16.mxu0 0
    %655 = vmatmul.mubr.bf16.gmra.mrb[0].mxu0 %v620
    %v656 = vpop.f32.mrb[0].mxu0
    %v657 = vadd.f32 %v572, %v656
    %v658 = vpop.f32.mrb[0].mxu0
    %v659 = vadd.f32 %v574, %v658
    %v660 = vpop.f32.mrb[0].mxu0
    %v661 = vpop.f32.mrb[0].mxu0
    %662 = vdwg.mxu0
    %663 = vmatprep.subr.bf16.mxu0 %v380
    %664 = vmatpush1.bf16.msra.mxu0 %v379
    %665 = vmatprep.subr.bf16.mxu0 %v384
    %666 = vmatpush1.bf16.msra.mxu0 %v383
    %667 = vmatprep.subr.bf16.mxu0 0
    %668 = vmatpush1.bf16.msra.mxu0 0
    %669 = vmatprep.subr.bf16.mxu0 0
    %670 = vmatpush1.bf16.msra.mxu0 0
    %671 = vmatprep.subr.bf16.mxu0 0
    %672 = vmatpush1.bf16.msra.mxu0 0
    %673 = vmatprep.subr.bf16.mxu0 0
    %674 = vmatpush1.bf16.msra.mxu0 0
    %675 = vmatprep.subr.bf16.mxu0 0
    %676 = vmatpush1.bf16.msra.mxu0 0
    %677 = vmatprep.subr.bf16.mxu0 0
    %678 = vmatpush1.bf16.msra.mxu0 0
    %679 = vmatprep.subr.bf16.mxu0 0
    %680 = vmatpush1.bf16.msra.mxu0 0
    %681 = vmatprep.subr.bf16.mxu0 0
    %682 = vmatpush1.bf16.msra.mxu0 0
    %683 = vmatprep.subr.bf16.mxu0 0
    %684 = vmatpush1.bf16.msra.mxu0 0
    %685 = vmatprep.subr.bf16.mxu0 0
    %686 = vmatpush1.bf16.msra.mxu0 0
    %687 = vmatprep.subr.bf16.mxu0 0
    %688 = vmatpush1.bf16.msra.mxu0 0
    %689 = vmatprep.subr.bf16.mxu0 0
    %690 = vmatpush1.bf16.msra.mxu0 0
    %691 = vmatprep.subr.bf16.mxu0 0
    %692 = vmatpush1.bf16.msra.mxu0 0
    %693 = vmatprep.subr.bf16.mxu0 0
    %694 = vmatpush1.bf16.msra.mxu0 0
    %695 = vmatprep.mubr.bf16.mxu0 0
    %696 = vmatmul.mubr.bf16.gmra.mrb[0].mxu0 %v620
    %v697 = vpop.f32.mrb[0].mxu0
    %v698 = vadd.f32 %v613, %v697
    %v699 = vpop.f32.mrb[0].mxu0
    %v700 = vadd.f32 %v615, %v699
    %v701 = vpop.f32.mrb[0].mxu0
    %v702 = vpop.f32.mrb[0].mxu0
    %703 = vdwg.mxu0
    %v704 = vadd.f32 %v657, %v483
    %v705 = vadd.f32 %v659, %v487
    %v706 = vadd.f32 %v698, %v491
    %v707 = vadd.f32 %v700, %v495
    %v708 = vxor.u32 %v704, 2147483648
    %v709 = vmul.f32 %v708, 1.442695
    %v710 = vpow.pop %v709
    %v711 = vadd.f32 %v710, 1.0
    %v712 = vrcp.pop %v711
    %v713 = vmul.f32 1.0, %v712
    %v714 = vxor.u32 %v705, 2147483648
    %v715 = vmul.f32 %v714, 1.442695
    %v716 = vpow.pop %v715
    %v717 = vadd.f32 %v716, 1.0
    %v718 = vrcp.pop %v717
    %v719 = vmul.f32 1.0, %v718
    %v720 = vtanh.pop %v706
    %v721 = vxor.u32 %v707, 2147483648
    %v722 = vmul.f32 %v721, 1.442695
    %v723 = vpow.pop %v722
    %v724 = vadd.f32 %v723, 1.0
    %v725 = vrcp.pop %v724
    %v726 = vmul.f32 1.0, %v725
    %v727 = vmul.f32 %v719, %v535
    %v728 = vmul.f32 %v713, %v720
    %v729 = vadd.f32 %v727, %v728
    %v730 = vtanh.pop %v729
    %v731 = vmul.f32 %v726, %v730
    %732 = vst [vmem:[#allocation3] sm:$0xff] %v729
    %733 = vst [vmem:[#allocation2] sm:$0xff] %v731
    %v734 = vpack.c.bf16 %v731, %v731
    %s735 = scalar_lea.vmem [#allocation10], 4
    %736 = vst [vmem:[%s735] sm:$0xf] %v734
    %s737 = scalar_lea.vmem [#allocation4], 8
    %v738 = vld [vmem:[%s737] sm:$0xf]
    %v739 = vld [vmem:[#allocation2] sm:$0xff]
    %v740 = vld [vmem:[#allocation3] sm:$0xff]
    %v741 = vpack.c.bf16 %v739, %v739
    %742 = vmatprep.subr.bf16.mxu0 %v208
    %743 = vmatpush1.bf16.msra.mxu0 %v207
    %744 = vmatprep.subr.bf16.mxu0 %v212
    %745 = vmatpush1.bf16.msra.mxu0 %v211
    %746 = vmatprep.subr.bf16.mxu0 %v216
    %747 = vmatpush1.bf16.msra.mxu0 %v215
    %748 = vmatprep.subr.bf16.mxu0 %v220
    %749 = vmatpush1.bf16.msra.mxu0 %v219
    %750 = vmatprep.subr.bf16.mxu0 %v224
    %751 = vmatpush1.bf16.msra.mxu0 %v223
    %752 = vmatprep.subr.bf16.mxu0 %v228
    %753 = vmatpush1.bf16.msra.mxu0 %v227
    %754 = vmatprep.subr.bf16.mxu0 %v232
    %755 = vmatpush1.bf16.msra.mxu0 %v231
    %756 = vmatprep.subr.bf16.mxu0 %v236
    %757 = vmatpush1.bf16.msra.mxu0 %v235
    %758 = vmatprep.subr.bf16.mxu0 0
    %759 = vmatpush1.bf16.msra.mxu0 0
    %760 = vmatprep.subr.bf16.mxu0 0
    %761 = vmatpush1.bf16.msra.mxu0 0
    %762 = vmatprep.subr.bf16.mxu0 0
    %763 = vmatpush1.bf16.msra.mxu0 0
    %764 = vmatprep.subr.bf16.mxu0 0
    %765 = vmatpush1.bf16.msra.mxu0 0
    %766 = vmatprep.subr.bf16.mxu0 0
    %767 = vmatpush1.bf16.msra.mxu0 0
    %768 = vmatprep.subr.bf16.mxu0 0
    %769 = vmatpush1.bf16.msra.mxu0 0
    %770 = vmatprep.subr.bf16.mxu0 0
    %771 = vmatpush1.bf16.msra.mxu0 0
    %772 = vmatprep.subr.bf16.mxu0 0
    %773 = vmatpush1.bf16.msra.mxu0 0
    %774 = vmatprep.mubr.bf16.mxu0 0
    %775 = vmatmul.mubr.bf16.gmra.mrb[0].mxu0 %v741
    %v776 = vpop.f32.mrb[0].mxu0
    %v777 = vadd.f32 0.0, %v776
    %v778 = vpop.f32.mrb[0].mxu0
    %v779 = vadd.f32 0.0, %v778
    %v780 = vpop.f32.mrb[0].mxu0
    %v781 = vpop.f32.mrb[0].mxu0
    %782 = vdwg.mxu0
    %783 = vmatprep.subr.bf16.mxu0 %v210
    %784 = vmatpush1.bf16.msra.mxu0 %v209
    %785 = vmatprep.subr.bf16.mxu0 %v214
    %786 = vmatpush1.bf16.msra.mxu0 %v213
    %787 = vmatprep.subr.bf16.mxu0 %v218
    %788 = vmatpush1.bf16.msra.mxu0 %v217
    %789 = vmatprep.subr.bf16.mxu0 %v222
    %790 = vmatpush1.bf16.msra.mxu0 %v221
    %791 = vmatprep.subr.bf16.mxu0 %v226
    %792 = vmatpush1.bf16.msra.mxu0 %v225
    %793 = vmatprep.subr.bf16.mxu0 %v230
    %794 = vmatpush1.bf16.msra.mxu0 %v229
    %795 = vmatprep.subr.bf16.mxu0 %v234
    %796 = vmatpush1.bf16.msra.mxu0 %v233
    %797 = vmatprep.subr.bf16.mxu0 %v238
    %798 = vmatpush1.bf16.msra.mxu0 %v237
    %799 = vmatprep.subr.bf16.mxu0 0
    %800 = vmatpush1.bf16.msra.mxu0 0
    %801 = vmatprep.subr.bf16.mxu0 0
    %802 = vmatpush1.bf16.msra.mxu0 0
    %803 = vmatprep.subr.bf16.mxu0 0
    %804 = vmatpush1.bf16.msra.mxu0 0
    %805 = vmatprep.subr.bf16.mxu0 0
    %806 = vmatpush1.bf16.msra.mxu0 0
    %807 = vmatprep.subr.bf16.mxu0 0
    %808 = vmatpush1.bf16.msra.mxu0 0
    %809 = vmatprep.subr.bf16.mxu0 0
    %810 = vmatpush1.bf16.msra.mxu0 0
    %811 = vmatprep.subr.bf16.mxu0 0
    %812 = vmatpush1.bf16.msra.mxu0 0
    %813 = vmatprep.subr.bf16.mxu0 0
    %814 = vmatpush1.bf16.msra.mxu0 0
    %815 = vmatprep.mubr.bf16.mxu0 0
    %816 = vmatmul.mubr.bf16.gmra.mrb[0].mxu0 %v741
    %v817 = vpop.f32.mrb[0].mxu0
    %v818 = vadd.f32 0.0, %v817
    %v819 = vpop.f32.mrb[0].mxu0
    %v820 = vadd.f32 0.0, %v819
    %v821 = vpop.f32.mrb[0].mxu0
    %v822 = vpop.f32.mrb[0].mxu0
    %823 = vdwg.mxu0
    %v825 = vsel %vm393, %v738, 0
    %827 = vmatprep.subr.bf16.mxu0 %v378
    %828 = vmatpush1.bf16.msra.mxu0 %v377
    %829 = vmatprep.subr.bf16.mxu0 %v382
    %830 = vmatpush1.bf16.msra.mxu0 %v381
    %831 = vmatprep.subr.bf16.mxu0 0
    %832 = vmatpush1.bf16.msra.mxu0 0
    %833 = vmatprep.subr.bf16.mxu0 0
    %834 = vmatpush1.bf16.msra.mxu0 0
    %835 = vmatprep.subr.bf16.mxu0 0
    %836 = vmatpush1.bf16.msra.mxu0 0
    %837 = vmatprep.subr.bf16.mxu0 0
    %838 = vmatpush1.bf16.msra.mxu0 0
    %839 = vmatprep.subr.bf16.mxu0 0
    %840 = vmatpush1.bf16.msra.mxu0 0
    %841 = vmatprep.subr.bf16.mxu0 0
    %842 = vmatpush1.bf16.msra.mxu0 0
    %843 = vmatprep.subr.bf16.mxu0 0
    %844 = vmatpush1.bf16.msra.mxu0 0
    %845 = vmatprep.subr.bf16.mxu0 0
    %846 = vmatpush1.bf16.msra.mxu0 0
    %847 = vmatprep.subr.bf16.mxu0 0
    %848 = vmatpush1.bf16.msra.mxu0 0
    %849 = vmatprep.subr.bf16.mxu0 0
    %850 = vmatpush1.bf16.msra.mxu0 0
    %851 = vmatprep.subr.bf16.mxu0 0
    %852 = vmatpush1.bf16.msra.mxu0 0
    %853 = vmatprep.subr.bf16.mxu0 0
    %854 = vmatpush1.bf16.msra.mxu0 0
    %855 = vmatprep.subr.bf16.mxu0 0
    %856 = vmatpush1.bf16.msra.mxu0 0
    %857 = vmatprep.subr.bf16.mxu0 0
    %858 = vmatpush1.bf16.msra.mxu0 0
    %859 = vmatprep.mubr.bf16.mxu0 0
    %860 = vmatmul.mubr.bf16.gmra.mrb[0].mxu0 %v825
    %v861 = vpop.f32.mrb[0].mxu0
    %v862 = vadd.f32 %v777, %v861
    %v863 = vpop.f32.mrb[0].mxu0
    %v864 = vadd.f32 %v779, %v863
    %v865 = vpop.f32.mrb[0].mxu0
    %v866 = vpop.f32.mrb[0].mxu0
    %867 = vdwg.mxu0
    %868 = vmatprep.subr.bf16.mxu0 %v380
    %869 = vmatpush1.bf16.msra.mxu0 %v379
    %870 = vmatprep.subr.bf16.mxu0 %v384
    %871 = vmatpush1.bf16.msra.mxu0 %v383
    %872 = vmatprep.subr.bf16.mxu0 0
    %873 = vmatpush1.bf16.msra.mxu0 0
    %874 = vmatprep.subr.bf16.mxu0 0
    %875 = vmatpush1.bf16.msra.mxu0 0
    %876 = vmatprep.subr.bf16.mxu0 0
    %877 = vmatpush1.bf16.msra.mxu0 0
    %878 = vmatprep.subr.bf16.mxu0 0
    %879 = vmatpush1.bf16.msra.mxu0 0
    %880 = vmatprep.subr.bf16.mxu0 0
    %881 = vmatpush1.bf16.msra.mxu0 0
    %882 = vmatprep.subr.bf16.mxu0 0
    %883 = vmatpush1.bf16.msra.mxu0 0
    %884 = vmatprep.subr.bf16.mxu0 0
    %885 = vmatpush1.bf16.msra.mxu0 0
    %886 = vmatprep.subr.bf16.mxu0 0
    %887 = vmatpush1.bf16.msra.mxu0 0
    %888 = vmatprep.subr.bf16.mxu0 0
    %889 = vmatpush1.bf16.msra.mxu0 0
    %890 = vmatprep.subr.bf16.mxu0 0
    %891 = vmatpush1.bf16.msra.mxu0 0
    %892 = vmatprep.subr.bf16.mxu0 0
    %893 = vmatpush1.bf16.msra.mxu0 0
    %894 = vmatprep.subr.bf16.mxu0 0
    %895 = vmatpush1.bf16.msra.mxu0 0
    %896 = vmatprep.subr.bf16.mxu0 0
    %897 = vmatpush1.bf16.msra.mxu0 0
    %898 = vmatprep.subr.bf16.mxu0 0
    %899 = vmatpush1.bf16.msra.mxu0 0
    %900 = vmatprep.mubr.bf16.mxu0 0
    %901 = vmatmul.mubr.bf16.gmra.mrb[0].mxu0 %v825
    %v902 = vpop.f32.mrb[0].mxu0
    %v903 = vadd.f32 %v818, %v902
    %v904 = vpop.f32.mrb[0].mxu0
    %v905 = vadd.f32 %v820, %v904
    %v906 = vpop.f32.mrb[0].mxu0
    %v907 = vpop.f32.mrb[0].mxu0
    %908 = vdwg.mxu0
    %v909 = vadd.f32 %v862, %v483
    %v910 = vadd.f32 %v864, %v487
    %v911 = vadd.f32 %v903, %v491
    %v912 = vadd.f32 %v905, %v495
    %v913 = vxor.u32 %v909, 2147483648
    %v914 = vmul.f32 %v913, 1.442695
    %v915 = vpow.pop %v914
    %v916 = vadd.f32 %v915, 1.0
    %v917 = vrcp.pop %v916
    %v918 = vmul.f32 1.0, %v917
    %v919 = vxor.u32 %v910, 2147483648
    %v920 = vmul.f32 %v919, 1.442695
    %v921 = vpow.pop %v920
    %v922 = vadd.f32 %v921, 1.0
    %v923 = vrcp.pop %v922
    %v924 = vmul.f32 1.0, %v923
    %v925 = vtanh.pop %v911
    %v926 = vxor.u32 %v912, 2147483648
    %v927 = vmul.f32 %v926, 1.442695
    %v928 = vpow.pop %v927
    %v929 = vadd.f32 %v928, 1.0
    %v930 = vrcp.pop %v929
    %v931 = vmul.f32 1.0, %v930
    %v932 = vmul.f32 %v924, %v740
    %v933 = vmul.f32 %v918, %v925
    %v934 = vadd.f32 %v932, %v933
    %v935 = vtanh.pop %v934
    %v936 = vmul.f32 %v931, %v935
    %937 = vst [vmem:[#allocation3] sm:$0xff] %v934
    %938 = vst [vmem:[#allocation2] sm:$0xff] %v936
    %v939 = vpack.c.bf16 %v936, %v936
    %s940 = scalar_lea.vmem [#allocation10], 8
    %941 = vst [vmem:[%s940] sm:$0xf] %v939
    %s942 = scalar_lea.vmem [#allocation4], 12
    %v943 = vld [vmem:[%s942] sm:$0xf]
    %v944 = vld [vmem:[#allocation2] sm:$0xff]
    %v945 = vld [vmem:[#allocation3] sm:$0xff]
    %v946 = vpack.c.bf16 %v944, %v944
    %947 = vmatprep.subr.bf16.mxu0 %v208
    %948 = vmatpush1.bf16.msra.mxu0 %v207
    %949 = vmatprep.subr.bf16.mxu0 %v212
    %950 = vmatpush1.bf16.msra.mxu0 %v211
    %951 = vmatprep.subr.bf16.mxu0 %v216
    %952 = vmatpush1.bf16.msra.mxu0 %v215
    %953 = vmatprep.subr.bf16.mxu0 %v220
    %954 = vmatpush1.bf16.msra.mxu0 %v219
    %955 = vmatprep.subr.bf16.mxu0 %v224
    %956 = vmatpush1.bf16.msra.mxu0 %v223
    %957 = vmatprep.subr.bf16.mxu0 %v228
    %958 = vmatpush1.bf16.msra.mxu0 %v227
    %959 = vmatprep.subr.bf16.mxu0 %v232
    %960 = vmatpush1.bf16.msra.mxu0 %v231
    %961 = vmatprep.subr.bf16.mxu0 %v236
    %962 = vmatpush1.bf16.msra.mxu0 %v235
    %963 = vmatprep.subr.bf16.mxu0 0
    %964 = vmatpush1.bf16.msra.mxu0 0
    %965 = vmatprep.subr.bf16.mxu0 0
    %966 = vmatpush1.bf16.msra.mxu0 0
    %967 = vmatprep.subr.bf16.mxu0 0
    %968 = vmatpush1.bf16.msra.mxu0 0
    %969 = vmatprep.subr.bf16.mxu0 0
    %970 = vmatpush1.bf16.msra.mxu0 0
    %971 = vmatprep.subr.bf16.mxu0 0
    %972 = vmatpush1.bf16.msra.mxu0 0
    %973 = vmatprep.subr.bf16.mxu0 0
    %974 = vmatpush1.bf16.msra.mxu0 0
    %975 = vmatprep.subr.bf16.mxu0 0
    %976 = vmatpush1.bf16.msra.mxu0 0
    %977 = vmatprep.subr.bf16.mxu0 0
    %978 = vmatpush1.bf16.msra.mxu0 0
    %979 = vmatprep.mubr.bf16.mxu0 0
    %980 = vmatmul.mubr.bf16.gmra.mrb[0].mxu0 %v946
    %v981 = vpop.f32.mrb[0].mxu0
    %v982 = vadd.f32 0.0, %v981
    %v983 = vpop.f32.mrb[0].mxu0
    %v984 = vadd.f32 0.0, %v983
    %v985 = vpop.f32.mrb[0].mxu0
    %v986 = vpop.f32.mrb[0].mxu0
    %987 = vdwg.mxu0
    %988 = vmatprep.subr.bf16.mxu0 %v210
    %989 = vmatpush1.bf16.msra.mxu0 %v209
    %990 = vmatprep.subr.bf16.mxu0 %v214
    %991 = vmatpush1.bf16.msra.mxu0 %v213
    %992 = vmatprep.subr.bf16.mxu0 %v218
    %993 = vmatpush1.bf16.msra.mxu0 %v217
    %994 = vmatprep.subr.bf16.mxu0 %v222
    %995 = vmatpush1.bf16.msra.mxu0 %v221
    %996 = vmatprep.subr.bf16.mxu0 %v226
    %997 = vmatpush1.bf16.msra.mxu0 %v225
    %998 = vmatprep.subr.bf16.mxu0 %v230
    %999 = vmatpush1.bf16.msra.mxu0 %v229
    %1000 = vmatprep.subr.bf16.mxu0 %v234
    %1001 = vmatpush1.bf16.msra.mxu0 %v233
    %1002 = vmatprep.subr.bf16.mxu0 %v238
    %1003 = vmatpush1.bf16.msra.mxu0 %v237
    %1004 = vmatprep.subr.bf16.mxu0 0
    %1005 = vmatpush1.bf16.msra.mxu0 0
    %1006 = vmatprep.subr.bf16.mxu0 0
    %1007 = vmatpush1.bf16.msra.mxu0 0
    %1008 = vmatprep.subr.bf16.mxu0 0
    %1009 = vmatpush1.bf16.msra.mxu0 0
    %1010 = vmatprep.subr.bf16.mxu0 0
    %1011 = vmatpush1.bf16.msra.mxu0 0
    %1012 = vmatprep.subr.bf16.mxu0 0
    %1013 = vmatpush1.bf16.msra.mxu0 0
    %1014 = vmatprep.subr.bf16.mxu0 0
    %1015 = vmatpush1.bf16.msra.mxu0 0
    %1016 = vmatprep.subr.bf16.mxu0 0
    %1017 = vmatpush1.bf16.msra.mxu0 0
    %1018 = vmatprep.subr.bf16.mxu0 0
    %1019 = vmatpush1.bf16.msra.mxu0 0
    %1020 = vmatprep.mubr.bf16.mxu0 0
    %1021 = vmatmul.mubr.bf16.gmra.mrb[0].mxu0 %v946
    %v1022 = vpop.f32.mrb[0].mxu0
    %v1023 = vadd.f32 0.0, %v1022
    %v1024 = vpop.f32.mrb[0].mxu0
    %v1025 = vadd.f32 0.0, %v1024
    %v1026 = vpop.f32.mrb[0].mxu0
    %v1027 = vpop.f32.mrb[0].mxu0
    %1028 = vdwg.mxu0
    %v1030 = vsel %vm393, %v943, 0
    %1032 = vmatprep.subr.bf16.mxu0 %v378
    %1033 = vmatpush1.bf16.msra.mxu0 %v377
    %1034 = vmatprep.subr.bf16.mxu0 %v382
    %1035 = vmatpush1.bf16.msra.mxu0 %v381
    %1036 = vmatprep.subr.bf16.mxu0 0
    %1037 = vmatpush1.bf16.msra.mxu0 0
    %1038 = vmatprep.subr.bf16.mxu0 0
    %1039 = vmatpush1.bf16.msra.mxu0 0
    %1040 = vmatprep.subr.bf16.mxu0 0
    %1041 = vmatpush1.bf16.msra.mxu0 0
    %1042 = vmatprep.subr.bf16.mxu0 0
    %1043 = vmatpush1.bf16.msra.mxu0 0
    %1044 = vmatprep.subr.bf16.mxu0 0
    %1045 = vmatpush1.bf16.msra.mxu0 0
    %1046 = vmatprep.subr.bf16.mxu0 0
    %1047 = vmatpush1.bf16.msra.mxu0 0
    %1048 = vmatprep.subr.bf16.mxu0 0
    %1049 = vmatpush1.bf16.msra.mxu0 0
    %1050 = vmatprep.subr.bf16.mxu0 0
    %1051 = vmatpush1.bf16.msra.mxu0 0
    %1052 = vmatprep.subr.bf16.mxu0 0
    %1053 = vmatpush1.bf16.msra.mxu0 0
    %1054 = vmatprep.subr.bf16.mxu0 0
    %1055 = vmatpush1.bf16.msra.mxu0 0
    %1056 = vmatprep.subr.bf16.mxu0 0
    %1057 = vmatpush1.bf16.msra.mxu0 0
    %1058 = vmatprep.subr.bf16.mxu0 0
    %1059 = vmatpush1.bf16.msra.mxu0 0
    %1060 = vmatprep.subr.bf16.mxu0 0
    %1061 = vmatpush1.bf16.msra.mxu0 0
    %1062 = vmatprep.subr.bf16.mxu0 0
    %1063 = vmatpush1.bf16.msra.mxu0 0
    %1064 = vmatprep.mubr.bf16.mxu0 0
    %1065 = vmatmul.mubr.bf16.gmra.mrb[0].mxu0 %v1030
    %v1066 = vpop.f32.mrb[0].mxu0
    %v1067 = vadd.f32 %v982, %v1066
    %v1068 = vpop.f32.mrb[0].mxu0
    %v1069 = vadd.f32 %v984, %v1068
    %v1070 = vpop.f32.mrb[0].mxu0
    %v1071 = vpop.f32.mrb[0].mxu0
    %1072 = vdwg.mxu0
    %1073 = vmatprep.subr.bf16.mxu0 %v380
    %1074 = vmatpush1.bf16.msra.mxu0 %v379
    %1075 = vmatprep.subr.bf16.mxu0 %v384
    %1076 = vmatpush1.bf16.msra.mxu0 %v383
    %1077 = vmatprep.subr.bf16.mxu0 0
    %1078 = vmatpush1.bf16.msra.mxu0 0
    %1079 = vmatprep.subr.bf16.mxu0 0
    %1080 = vmatpush1.bf16.msra.mxu0 0
    %1081 = vmatprep.subr.bf16.mxu0 0
    %1082 = vmatpush1.bf16.msra.mxu0 0
    %1083 = vmatprep.subr.bf16.mxu0 0
    %1084 = vmatpush1.bf16.msra.mxu0 0
    %1085 = vmatprep.subr.bf16.mxu0 0
    %1086 = vmatpush1.bf16.msra.mxu0 0
    %1087 = vmatprep.subr.bf16.mxu0 0
    %1088 = vmatpush1.bf16.msra.mxu0 0
    %1089 = vmatprep.subr.bf16.mxu0 0
    %1090 = vmatpush1.bf16.msra.mxu0 0
    %1091 = vmatprep.subr.bf16.mxu0 0
    %1092 = vmatpush1.bf16.msra.mxu0 0
    %1093 = vmatprep.subr.bf16.mxu0 0
    %1094 = vmatpush1.bf16.msra.mxu0 0
    %1095 = vmatprep.subr.bf16.mxu0 0
    %1096 = vmatpush1.bf16.msra.mxu0 0
    %1097 = vmatprep.subr.bf16.mxu0 0
    %1098 = vmatpush1.bf16.msra.mxu0 0
    %1099 = vmatprep.subr.bf16.mxu0 0
    %1100 = vmatpush1.bf16.msra.mxu0 0
    %1101 = vmatprep.subr.bf16.mxu0 0
    %1102 = vmatpush1.bf16.msra.mxu0 0
    %1103 = vmatprep.subr.bf16.mxu0 0
    %1104 = vmatpush1.bf16.msra.mxu0 0
    %1105 = vmatprep.mubr.bf16.mxu0 0
    %1106 = vmatmul.mubr.bf16.gmra.mrb[0].mxu0 %v1030
    %v1107 = vpop.f32.mrb[0].mxu0
    %v1108 = vadd.f32 %v1023, %v1107
    %v1109 = vpop.f32.mrb[0].mxu0
    %v1110 = vadd.f32 %v1025, %v1109
    %v1111 = vpop.f32.mrb[0].mxu0
    %v1112 = vpop.f32.mrb[0].mxu0
    %1113 = vdwg.mxu0
    %v1114 = vadd.f32 %v1067, %v483
    %v1115 = vadd.f32 %v1069, %v487
    %v1116 = vadd.f32 %v1108, %v491
    %v1117 = vadd.f32 %v1110, %v495
    %v1118 = vxor.u32 %v1114, 2147483648
    %v1119 = vmul.f32 %v1118, 1.442695
    %v1120 = vpow.pop %v1119
    %v1121 = vadd.f32 %v1120, 1.0
    %v1122 = vrcp.pop %v1121
    %v1123 = vmul.f32 1.0, %v1122
    %v1124 = vxor.u32 %v1115, 2147483648
    %v1125 = vmul.f32 %v1124, 1.442695
    %v1126 = vpow.pop %v1125
    %v1127 = vadd.f32 %v1126, 1.0
    %v1128 = vrcp.pop %v1127
    %v1129 = vmul.f32 1.0, %v1128
    %v1130 = vtanh.pop %v1116
    %v1131 = vxor.u32 %v1117, 2147483648
    %v1132 = vmul.f32 %v1131, 1.442695
    %v1133 = vpow.pop %v1132
    %v1134 = vadd.f32 %v1133, 1.0
    %v1135 = vrcp.pop %v1134
    %v1136 = vmul.f32 1.0, %v1135
    %v1137 = vmul.f32 %v1129, %v945
    %v1138 = vmul.f32 %v1123, %v1130
    %v1139 = vadd.f32 %v1137, %v1138
    %v1140 = vtanh.pop %v1139
    %v1141 = vmul.f32 %v1136, %v1140
    %1142 = vst [vmem:[#allocation3] sm:$0xff] %v1139
    %1143 = vst [vmem:[#allocation2] sm:$0xff] %v1141
    %v1144 = vpack.c.bf16 %v1141, %v1141
    %s1145 = scalar_lea.vmem [#allocation10], 12
    %1146 = vst [vmem:[%s1145] sm:$0xf] %v1144
    %s1147 = scalar_lea.vmem [#allocation4], 16
    %v1148 = vld [vmem:[%s1147] sm:$0xf]
    %v1149 = vld [vmem:[#allocation2] sm:$0xff]
    %v1150 = vld [vmem:[#allocation3] sm:$0xff]
    %v1151 = vpack.c.bf16 %v1149, %v1149
    %1152 = vmatprep.subr.bf16.mxu0 %v208
    %1153 = vmatpush1.bf16.msra.mxu0 %v207
    %1154 = vmatprep.subr.bf16.mxu0 %v212
    %1155 = vmatpush1.bf16.msra.mxu0 %v211
    %1156 = vmatprep.subr.bf16.mxu0 %v216
    %1157 = vmatpush1.bf16.msra.mxu0 %v215
    %1158 = vmatprep.subr.bf16.mxu0 %v220
    %1159 = vmatpush1.bf16.msra.mxu0 %v219
    %1160 = vmatprep.subr.bf16.mxu0 %v224
    %1161 = vmatpush1.bf16.msra.mxu0 %v223
    %1162 = vmatprep.subr.bf16.mxu0 %v228
    %1163 = vmatpush1.bf16.msra.mxu0 %v227
    %1164 = vmatprep.subr.bf16.mxu0 %v232
    %1165 = vmatpush1.bf16.msra.mxu0 %v231
    %1166 = vmatprep.subr.bf16.mxu0 %v236
    %1167 = vmatpush1.bf16.msra.mxu0 %v235
    %1168 = vmatprep.subr.bf16.mxu0 0
    %1169 = vmatpush1.bf16.msra.mxu0 0
    %1170 = vmatprep.subr.bf16.mxu0 0
    %1171 = vmatpush1.bf16.msra.mxu0 0
    %1172 = vmatprep.subr.bf16.mxu0 0
    %1173 = vmatpush1.bf16.msra.mxu0 0
    %1174 = vmatprep.subr.bf16.mxu0 0
    %1175 = vmatpush1.bf16.msra.mxu0 0
    %1176 = vmatprep.subr.bf16.mxu0 0
    %1177 = vmatpush1.bf16.msra.mxu0 0
    %1178 = vmatprep.subr.bf16.mxu0 0
    %1179 = vmatpush1.bf16.msra.mxu0 0
    %1180 = vmatprep.subr.bf16.mxu0 0
    %1181 = vmatpush1.bf16.msra.mxu0 0
    %1182 = vmatprep.subr.bf16.mxu0 0
    %1183 = vmatpush1.bf16.msra.mxu0 0
    %1184 = vmatprep.mubr.bf16.mxu0 0
    %1185 = vmatmul.mubr.bf16.gmra.mrb[0].mxu0 %v1151
    %v1186 = vpop.f32.mrb[0].mxu0
    %v1187 = vadd.f32 0.0, %v1186
    %v1188 = vpop.f32.mrb[0].mxu0
    %v1189 = vadd.f32 0.0, %v1188
    %v1190 = vpop.f32.mrb[0].mxu0
    %v1191 = vpop.f32.mrb[0].mxu0
    %1192 = vdwg.mxu0
    %1193 = vmatprep.subr.bf16.mxu0 %v210
    %1194 = vmatpush1.bf16.msra.mxu0 %v209
    %1195 = vmatprep.subr.bf16.mxu0 %v214
    %1196 = vmatpush1.bf16.msra.mxu0 %v213
    %1197 = vmatprep.subr.bf16.mxu0 %v218
    %1198 = vmatpush1.bf16.msra.mxu0 %v217
    %1199 = vmatprep.subr.bf16.mxu0 %v222
    %1200 = vmatpush1.bf16.msra.mxu0 %v221
    %1201 = vmatprep.subr.bf16.mxu0 %v226
    %1202 = vmatpush1.bf16.msra.mxu0 %v225
    %1203 = vmatprep.subr.bf16.mxu0 %v230
    %1204 = vmatpush1.bf16.msra.mxu0 %v229
    %1205 = vmatprep.subr.bf16.mxu0 %v234
    %1206 = vmatpush1.bf16.msra.mxu0 %v233
    %1207 = vmatprep.subr.bf16.mxu0 %v238
    %1208 = vmatpush1.bf16.msra.mxu0 %v237
    %1209 = vmatprep.subr.bf16.mxu0 0
    %1210 = vmatpush1.bf16.msra.mxu0 0
    %1211 = vmatprep.subr.bf16.mxu0 0
    %1212 = vmatpush1.bf16.msra.mxu0 0
    %1213 = vmatprep.subr.bf16.mxu0 0
    %1214 = vmatpush1.bf16.msra.mxu0 0
    %1215 = vmatprep.subr.bf16.mxu0 0
    %1216 = vmatpush1.bf16.msra.mxu0 0
    %1217 = vmatprep.subr.bf16.mxu0 0
    %1218 = vmatpush1.bf16.msra.mxu0 0
    %1219 = vmatprep.subr.bf16.mxu0 0
    %1220 = vmatpush1.bf16.msra.mxu0 0
    %1221 = vmatprep.subr.bf16.mxu0 0
    %1222 = vmatpush1.bf16.msra.mxu0 0
    %1223 = vmatprep.subr.bf16.mxu0 0
    %1224 = vmatpush1.bf16.msra.mxu0 0
    %1225 = vmatprep.mubr.bf16.mxu0 0
    %1226 = vmatmul.mubr.bf16.gmra.mrb[0].mxu0 %v1151
    %v1227 = vpop.f32.mrb[0].mxu0
    %v1228 = vadd.f32 0.0, %v1227
    %v1229 = vpop.f32.mrb[0].mxu0
    %v1230 = vadd.f32 0.0, %v1229
    %v1231 = vpop.f32.mrb[0].mxu0
    %v1232 = vpop.f32.mrb[0].mxu0
    %1233 = vdwg.mxu0
    %v1235 = vsel %vm393, %v1148, 0
    %1237 = vmatprep.subr.bf16.mxu0 %v378
    %1238 = vmatpush1.bf16.msra.mxu0 %v377
    %1239 = vmatprep.subr.bf16.mxu0 %v382
    %1240 = vmatpush1.bf16.msra.mxu0 %v381
    %1241 = vmatprep.subr.bf16.mxu0 0
    %1242 = vmatpush1.bf16.msra.mxu0 0
    %1243 = vmatprep.subr.bf16.mxu0 0
    %1244 = vmatpush1.bf16.msra.mxu0 0
    %1245 = vmatprep.subr.bf16.mxu0 0
    %1246 = vmatpush1.bf16.msra.mxu0 0
    %1247 = vmatprep.subr.bf16.mxu0 0
    %1248 = vmatpush1.bf16.msra.mxu0 0
    %1249 = vmatprep.subr.bf16.mxu0 0
    %1250 = vmatpush1.bf16.msra.mxu0 0
    %1251 = vmatprep.subr.bf16.mxu0 0
    %1252 = vmatpush1.bf16.msra.mxu0 0
    %1253 = vmatprep.subr.bf16.mxu0 0
    %1254 = vmatpush1.bf16.msra.mxu0 0
    %1255 = vmatprep.subr.bf16.mxu0 0
    %1256 = vmatpush1.bf16.msra.mxu0 0
    %1257 = vmatprep.subr.bf16.mxu0 0
    %1258 = vmatpush1.bf16.msra.mxu0 0
    %1259 = vmatprep.subr.bf16.mxu0 0
    %1260 = vmatpush1.bf16.msra.mxu0 0
    %1261 = vmatprep.subr.bf16.mxu0 0
    %1262 = vmatpush1.bf16.msra.mxu0 0
    %1263 = vmatprep.subr.bf16.mxu0 0
    %1264 = vmatpush1.bf16.msra.mxu0 0
    %1265 = vmatprep.subr.bf16.mxu0 0
    %1266 = vmatpush1.bf16.msra.mxu0 0
    %1267 = vmatprep.subr.bf16.mxu0 0
    %1268 = vmatpush1.bf16.msra.mxu0 0
    %1269 = vmatprep.mubr.bf16.mxu0 0
    %1270 = vmatmul.mubr.bf16.gmra.mrb[0].mxu0 %v1235
    %v1271 = vpop.f32.mrb[0].mxu0
    %v1272 = vadd.f32 %v1187, %v1271
    %v1273 = vpop.f32.mrb[0].mxu0
    %v1274 = vadd.f32 %v1189, %v1273
    %v1275 = vpop.f32.mrb[0].mxu0
    %v1276 = vpop.f32.mrb[0].mxu0
    %1277 = vdwg.mxu0
    %1278 = vmatprep.subr.bf16.mxu0 %v380
    %1279 = vmatpush1.bf16.msra.mxu0 %v379
    %1280 = vmatprep.subr.bf16.mxu0 %v384
    %1281 = vmatpush1.bf16.msra.mxu0 %v383
    %1282 = vmatprep.subr.bf16.mxu0 0
    %1283 = vmatpush1.bf16.msra.mxu0 0
    %1284 = vmatprep.subr.bf16.mxu0 0
    %1285 = vmatpush1.bf16.msra.mxu0 0
    %1286 = vmatprep.subr.bf16.mxu0 0
    %1287 = vmatpush1.bf16.msra.mxu0 0
    %1288 = vmatprep.subr.bf16.mxu0 0
    %1289 = vmatpush1.bf16.msra.mxu0 0
    %1290 = vmatprep.subr.bf16.mxu0 0
    %1291 = vmatpush1.bf16.msra.mxu0 0
    %1292 = vmatprep.subr.bf16.mxu0 0
    %1293 = vmatpush1.bf16.msra.mxu0 0
    %1294 = vmatprep.subr.bf16.mxu0 0
    %1295 = vmatpush1.bf16.msra.mxu0 0
    %1296 = vmatprep.subr.bf16.mxu0 0
    %1297 = vmatpush1.bf16.msra.mxu0 0
    %1298 = vmatprep.subr.bf16.mxu0 0
    %1299 = vmatpush1.bf16.msra.mxu0 0
    %1300 = vmatprep.subr.bf16.mxu0 0
    %1301 = vmatpush1.bf16.msra.mxu0 0
    %1302 = vmatprep.subr.bf16.mxu0 0
    %1303 = vmatpush1.bf16.msra.mxu0 0
    %1304 = vmatprep.subr.bf16.mxu0 0
    %1305 = vmatpush1.bf16.msra.mxu0 0
    %1306 = vmatprep.subr.bf16.mxu0 0
    %1307 = vmatpush1.bf16.msra.mxu0 0
    %1308 = vmatprep.subr.bf16.mxu0 0
    %1309 = vmatpush1.bf16.msra.mxu0 0
    %1310 = vmatprep.mubr.bf16.mxu0 0
    %1311 = vmatmul.mubr.bf16.gmra.mrb[0].mxu0 %v1235
    %v1312 = vpop.f32.mrb[0].mxu0
    %v1313 = vadd.f32 %v1228, %v1312
    %v1314 = vpop.f32.mrb[0].mxu0
    %v1315 = vadd.f32 %v1230, %v1314
    %v1316 = vpop.f32.mrb[0].mxu0
    %v1317 = vpop.f32.mrb[0].mxu0
    %1318 = vdwg.mxu0
    %v1319 = vadd.f32 %v1272, %v483
    %v1320 = vadd.f32 %v1274, %v487
    %v1321 = vadd.f32 %v1313, %v491
    %v1322 = vadd.f32 %v1315, %v495
    %v1323 = vxor.u32 %v1319, 2147483648
    %v1324 = vmul.f32 %v1323, 1.442695
    %v1325 = vpow.pop %v1324
    %v1326 = vadd.f32 %v1325, 1.0
    %v1327 = vrcp.pop %v1326
    %v1328 = vmul.f32 1.0, %v1327
    %v1329 = vxor.u32 %v1320, 2147483648
    %v1330 = vmul.f32 %v1329, 1.442695
    %v1331 = vpow.pop %v1330
    %v1332 = vadd.f32 %v1331, 1.0
    %v1333 = vrcp.pop %v1332
    %v1334 = vmul.f32 1.0, %v1333
    %v1335 = vtanh.pop %v1321
    %v1336 = vxor.u32 %v1322, 2147483648
    %v1337 = vmul.f32 %v1336, 1.442695
    %v1338 = vpow.pop %v1337
    %v1339 = vadd.f32 %v1338, 1.0
    %v1340 = vrcp.pop %v1339
    %v1341 = vmul.f32 1.0, %v1340
    %v1342 = vmul.f32 %v1334, %v1150
    %v1343 = vmul.f32 %v1328, %v1335
    %v1344 = vadd.f32 %v1342, %v1343
    %v1345 = vtanh.pop %v1344
    %v1346 = vmul.f32 %v1341, %v1345
    %1347 = vst [vmem:[#allocation3] sm:$0xff] %v1344
    %1348 = vst [vmem:[#allocation2] sm:$0xff] %v1346
    %v1349 = vpack.c.bf16 %v1346, %v1346
    %s1350 = scalar_lea.vmem [#allocation10], 16
    %1351 = vst [vmem:[%s1350] sm:$0xf] %v1349
    %s1352 = scalar_lea.vmem [#allocation4], 20
    %v1353 = vld [vmem:[%s1352] sm:$0xf]
    %v1354 = vld [vmem:[#allocation2] sm:$0xff]
    %v1355 = vld [vmem:[#allocation3] sm:$0xff]
    %v1356 = vpack.c.bf16 %v1354, %v1354
    %1357 = vmatprep.subr.bf16.mxu0 %v208
    %1358 = vmatpush1.bf16.msra.mxu0 %v207
    %1359 = vmatprep.subr.bf16.mxu0 %v212
    %1360 = vmatpush1.bf16.msra.mxu0 %v211
    %1361 = vmatprep.subr.bf16.mxu0 %v216
    %1362 = vmatpush1.bf16.msra.mxu0 %v215
    %1363 = vmatprep.subr.bf16.mxu0 %v220
    %1364 = vmatpush1.bf16.msra.mxu0 %v219
    %1365 = vmatprep.subr.bf16.mxu0 %v224
    %1366 = vmatpush1.bf16.msra.mxu0 %v223
    %1367 = vmatprep.subr.bf16.mxu0 %v228
    %1368 = vmatpush1.bf16.msra.mxu0 %v227
    %1369 = vmatprep.subr.bf16.mxu0 %v232
    %1370 = vmatpush1.bf16.msra.mxu0 %v231
    %1371 = vmatprep.subr.bf16.mxu0 %v236
    %1372 = vmatpush1.bf16.msra.mxu0 %v235
    %1373 = vmatprep.subr.bf16.mxu0 0
    %1374 = vmatpush1.bf16.msra.mxu0 0
    %1375 = vmatprep.subr.bf16.mxu0 0
    %1376 = vmatpush1.bf16.msra.mxu0 0
    %1377 = vmatprep.subr.bf16.mxu0 0
    %1378 = vmatpush1.bf16.msra.mxu0 0
    %1379 = vmatprep.subr.bf16.mxu0 0
    %1380 = vmatpush1.bf16.msra.mxu0 0
    %1381 = vmatprep.subr.bf16.mxu0 0
    %1382 = vmatpush1.bf16.msra.mxu0 0
    %1383 = vmatprep.subr.bf16.mxu0 0
    %1384 = vmatpush1.bf16.msra.mxu0 0
    %1385 = vmatprep.subr.bf16.mxu0 0
    %1386 = vmatpush1.bf16.msra.mxu0 0
    %1387 = vmatprep.subr.bf16.mxu0 0
    %1388 = vmatpush1.bf16.msra.mxu0 0
    %1389 = vmatprep.mubr.bf16.mxu0 0
    %1390 = vmatmul.mubr.bf16.gmra.mrb[0].mxu0 %v1356
    %v1391 = vpop.f32.mrb[0].mxu0
    %v1392 = vadd.f32 0.0, %v1391
    %v1393 = vpop.f32.mrb[0].mxu0
    %v1394 = vadd.f32 0.0, %v1393
    %v1395 = vpop.f32.mrb[0].mxu0
    %v1396 = vpop.f32.mrb[0].mxu0
    %1397 = vdwg.mxu0
    %1398 = vmatprep.subr.bf16.mxu0 %v210
    %1399 = vmatpush1.bf16.msra.mxu0 %v209
    %1400 = vmatprep.subr.bf16.mxu0 %v214
    %1401 = vmatpush1.bf16.msra.mxu0 %v213
    %1402 = vmatprep.subr.bf16.mxu0 %v218
    %1403 = vmatpush1.bf16.msra.mxu0 %v217
    %1404 = vmatprep.subr.bf16.mxu0 %v222
    %1405 = vmatpush1.bf16.msra.mxu0 %v221
    %1406 = vmatprep.subr.bf16.mxu0 %v226
    %1407 = vmatpush1.bf16.msra.mxu0 %v225
    %1408 = vmatprep.subr.bf16.mxu0 %v230
    %1409 = vmatpush1.bf16.msra.mxu0 %v229
    %1410 = vmatprep.subr.bf16.mxu0 %v234
    %1411 = vmatpush1.bf16.msra.mxu0 %v233
    %1412 = vmatprep.subr.bf16.mxu0 %v238
    %1413 = vmatpush1.bf16.msra.mxu0 %v237
    %1414 = vmatprep.subr.bf16.mxu0 0
    %1415 = vmatpush1.bf16.msra.mxu0 0
    %1416 = vmatprep.subr.bf16.mxu0 0
    %1417 = vmatpush1.bf16.msra.mxu0 0
    %1418 = vmatprep.subr.bf16.mxu0 0
    %1419 = vmatpush1.bf16.msra.mxu0 0
    %1420 = vmatprep.subr.bf16.mxu0 0
    %1421 = vmatpush1.bf16.msra.mxu0 0
    %1422 = vmatprep.subr.bf16.mxu0 0
    %1423 = vmatpush1.bf16.msra.mxu0 0
    %1424 = vmatprep.subr.bf16.mxu0 0
    %1425 = vmatpush1.bf16.msra.mxu0 0
    %1426 = vmatprep.subr.bf16.mxu0 0
    %1427 = vmatpush1.bf16.msra.mxu0 0
    %1428 = vmatprep.subr.bf16.mxu0 0
    %1429 = vmatpush1.bf16.msra.mxu0 0
    %1430 = vmatprep.mubr.bf16.mxu0 0
    %1431 = vmatmul.mubr.bf16.gmra.mrb[0].mxu0 %v1356
    %v1432 = vpop.f32.mrb[0].mxu0
    %v1433 = vadd.f32 0.0, %v1432
    %v1434 = vpop.f32.mrb[0].mxu0
    %v1435 = vadd.f32 0.0, %v1434
    %v1436 = vpop.f32.mrb[0].mxu0
    %v1437 = vpop.f32.mrb[0].mxu0
    %1438 = vdwg.mxu0
    %v1440 = vsel %vm393, %v1353, 0
    %1442 = vmatprep.subr.bf16.mxu0 %v378
    %1443 = vmatpush1.bf16.msra.mxu0 %v377
    %1444 = vmatprep.subr.bf16.mxu0 %v382
    %1445 = vmatpush1.bf16.msra.mxu0 %v381
    %1446 = vmatprep.subr.bf16.mxu0 0
    %1447 = vmatpush1.bf16.msra.mxu0 0
    %1448 = vmatprep.subr.bf16.mxu0 0
    %1449 = vmatpush1.bf16.msra.mxu0 0
    %1450 = vmatprep.subr.bf16.mxu0 0
    %1451 = vmatpush1.bf16.msra.mxu0 0
    %1452 = vmatprep.subr.bf16.mxu0 0
    %1453 = vmatpush1.bf16.msra.mxu0 0
    %1454 = vmatprep.subr.bf16.mxu0 0
    %1455 = vmatpush1.bf16.msra.mxu0 0
    %1456 = vmatprep.subr.bf16.mxu0 0
    %1457 = vmatpush1.bf16.msra.mxu0 0
    %1458 = vmatprep.subr.bf16.mxu0 0
    %1459 = vmatpush1.bf16.msra.mxu0 0
    %1460 = vmatprep.subr.bf16.mxu0 0
    %1461 = vmatpush1.bf16.msra.mxu0 0
    %1462 = vmatprep.subr.bf16.mxu0 0
    %1463 = vmatpush1.bf16.msra.mxu0 0
    %1464 = vmatprep.subr.bf16.mxu0 0
    %1465 = vmatpush1.bf16.msra.mxu0 0
    %1466 = vmatprep.subr.bf16.mxu0 0
    %1467 = vmatpush1.bf16.msra.mxu0 0
    %1468 = vmatprep.subr.bf16.mxu0 0
    %1469 = vmatpush1.bf16.msra.mxu0 0
    %1470 = vmatprep.subr.bf16.mxu0 0
    %1471 = vmatpush1.bf16.msra.mxu0 0
    %1472 = vmatprep.subr.bf16.mxu0 0
    %1473 = vmatpush1.bf16.msra.mxu0 0
    %1474 = vmatprep.mubr.bf16.mxu0 0
    %1475 = vmatmul.mubr.bf16.gmra.mrb[0].mxu0 %v1440
    %v1476 = vpop.f32.mrb[0].mxu0
    %v1477 = vadd.f32 %v1392, %v1476
    %v1478 = vpop.f32.mrb[0].mxu0
    %v1479 = vadd.f32 %v1394, %v1478
    %v1480 = vpop.f32.mrb[0].mxu0
    %v1481 = vpop.f32.mrb[0].mxu0
    %1482 = vdwg.mxu0
    %1483 = vmatprep.subr.bf16.mxu0 %v380
    %1484 = vmatpush1.bf16.msra.mxu0 %v379
    %1485 = vmatprep.subr.bf16.mxu0 %v384
    %1486 = vmatpush1.bf16.msra.mxu0 %v383
    %1487 = vmatprep.subr.bf16.mxu0 0
    %1488 = vmatpush1.bf16.msra.mxu0 0
    %1489 = vmatprep.subr.bf16.mxu0 0
    %1490 = vmatpush1.bf16.msra.mxu0 0
    %1491 = vmatprep.subr.bf16.mxu0 0
    %1492 = vmatpush1.bf16.msra.mxu0 0
    %1493 = vmatprep.subr.bf16.mxu0 0
    %1494 = vmatpush1.bf16.msra.mxu0 0
    %1495 = vmatprep.subr.bf16.mxu0 0
    %1496 = vmatpush1.bf16.msra.mxu0 0
    %1497 = vmatprep.subr.bf16.mxu0 0
    %1498 = vmatpush1.bf16.msra.mxu0 0
    %1499 = vmatprep.subr.bf16.mxu0 0
    %1500 = vmatpush1.bf16.msra.mxu0 0
    %1501 = vmatprep.subr.bf16.mxu0 0
    %1502 = vmatpush1.bf16.msra.mxu0 0
    %1503 = vmatprep.subr.bf16.mxu0 0
    %1504 = vmatpush1.bf16.msra.mxu0 0
    %1505 = vmatprep.subr.bf16.mxu0 0
    %1506 = vmatpush1.bf16.msra.mxu0 0
    %1507 = vmatprep.subr.bf16.mxu0 0
    %1508 = vmatpush1.bf16.msra.mxu0 0
    %1509 = vmatprep.subr.bf16.mxu0 0
    %1510 = vmatpush1.bf16.msra.mxu0 0
    %1511 = vmatprep.subr.bf16.mxu0 0
    %1512 = vmatpush1.bf16.msra.mxu0 0
    %1513 = vmatprep.subr.bf16.mxu0 0
    %1514 = vmatpush1.bf16.msra.mxu0 0
    %1515 = vmatprep.mubr.bf16.mxu0 0
    %1516 = vmatmul.mubr.bf16.gmra.mrb[0].mxu0 %v1440
    %v1517 = vpop.f32.mrb[0].mxu0
    %v1518 = vadd.f32 %v1433, %v1517
    %v1519 = vpop.f32.mrb[0].mxu0
    %v1520 = vadd.f32 %v1435, %v1519
    %v1521 = vpop.f32.mrb[0].mxu0
    %v1522 = vpop.f32.mrb[0].mxu0
    %1523 = vdwg.mxu0
    %v1524 = vadd.f32 %v1477, %v483
    %v1525 = vadd.f32 %v1479, %v487
    %v1526 = vadd.f32 %v1518, %v491
    %v1527 = vadd.f32 %v1520, %v495
    %v1528 = vxor.u32 %v1524, 2147483648
    %v1529 = vmul.f32 %v1528, 1.442695
    %v1530 = vpow.pop %v1529
    %v1531 = vadd.f32 %v1530, 1.0
    %v1532 = vrcp.pop %v1531
    %v1533 = vmul.f32 1.0, %v1532
    %v1534 = vxor.u32 %v1525, 2147483648
    %v1535 = vmul.f32 %v1534, 1.442695
    %v1536 = vpow.pop %v1535
    %v1537 = vadd.f32 %v1536, 1.0
    %v1538 = vrcp.pop %v1537
    %v1539 = vmul.f32 1.0, %v1538
    %v1540 = vtanh.pop %v1526
    %v1541 = vxor.u32 %v1527, 2147483648
    %v1542 = vmul.f32 %v1541, 1.442695
    %v1543 = vpow.pop %v1542
    %v1544 = vadd.f32 %v1543, 1.0
    %v1545 = vrcp.pop %v1544
    %v1546 = vmul.f32 1.0, %v1545
    %v1547 = vmul.f32 %v1539, %v1355
    %v1548 = vmul.f32 %v1533, %v1540
    %v1549 = vadd.f32 %v1547, %v1548
    %v1550 = vtanh.pop %v1549
    %v1551 = vmul.f32 %v1546, %v1550
    %1552 = vst [vmem:[#allocation3] sm:$0xff] %v1549
    %1553 = vst [vmem:[#allocation2] sm:$0xff] %v1551
    %v1554 = vpack.c.bf16 %v1551, %v1551
    %s1555 = scalar_lea.vmem [#allocation10], 20
    %1556 = vst [vmem:[%s1555] sm:$0xf] %v1554
    %s1557 = scalar_lea.vmem [#allocation4], 24
    %v1558 = vld [vmem:[%s1557] sm:$0xf]
    %v1559 = vld [vmem:[#allocation2] sm:$0xff]
    %v1560 = vld [vmem:[#allocation3] sm:$0xff]
    %v1561 = vpack.c.bf16 %v1559, %v1559
    %1562 = vmatprep.subr.bf16.mxu0 %v208
    %1563 = vmatpush1.bf16.msra.mxu0 %v207
    %1564 = vmatprep.subr.bf16.mxu0 %v212
    %1565 = vmatpush1.bf16.msra.mxu0 %v211
    %1566 = vmatprep.subr.bf16.mxu0 %v216
    %1567 = vmatpush1.bf16.msra.mxu0 %v215
    %1568 = vmatprep.subr.bf16.mxu0 %v220
    %1569 = vmatpush1.bf16.msra.mxu0 %v219
    %1570 = vmatprep.subr.bf16.mxu0 %v224
    %1571 = vmatpush1.bf16.msra.mxu0 %v223
    %1572 = vmatprep.subr.bf16.mxu0 %v228
    %1573 = vmatpush1.bf16.msra.mxu0 %v227
    %1574 = vmatprep.subr.bf16.mxu0 %v232
    %1575 = vmatpush1.bf16.msra.mxu0 %v231
    %1576 = vmatprep.subr.bf16.mxu0 %v236
    %1577 = vmatpush1.bf16.msra.mxu0 %v235
    %1578 = vmatprep.subr.bf16.mxu0 0
    %1579 = vmatpush1.bf16.msra.mxu0 0
    %1580 = vmatprep.subr.bf16.mxu0 0
    %1581 = vmatpush1.bf16.msra.mxu0 0
    %1582 = vmatprep.subr.bf16.mxu0 0
    %1583 = vmatpush1.bf16.msra.mxu0 0
    %1584 = vmatprep.subr.bf16.mxu0 0
    %1585 = vmatpush1.bf16.msra.mxu0 0
    %1586 = vmatprep.subr.bf16.mxu0 0
    %1587 = vmatpush1.bf16.msra.mxu0 0
    %1588 = vmatprep.subr.bf16.mxu0 0
    %1589 = vmatpush1.bf16.msra.mxu0 0
    %1590 = vmatprep.subr.bf16.mxu0 0
    %1591 = vmatpush1.bf16.msra.mxu0 0
    %1592 = vmatprep.subr.bf16.mxu0 0
    %1593 = vmatpush1.bf16.msra.mxu0 0
    %1594 = vmatprep.mubr.bf16.mxu0 0
    %1595 = vmatmul.mubr.bf16.gmra.mrb[0].mxu0 %v1561
    %v1596 = vpop.f32.mrb[0].mxu0
    %v1597 = vadd.f32 0.0, %v1596
    %v1598 = vpop.f32.mrb[0].mxu0
    %v1599 = vadd.f32 0.0, %v1598
    %v1600 = vpop.f32.mrb[0].mxu0
    %v1601 = vpop.f32.mrb[0].mxu0
    %1602 = vdwg.mxu0
    %1603 = vmatprep.subr.bf16.mxu0 %v210
    %1604 = vmatpush1.bf16.msra.mxu0 %v209
    %1605 = vmatprep.subr.bf16.mxu0 %v214
    %1606 = vmatpush1.bf16.msra.mxu0 %v213
    %1607 = vmatprep.subr.bf16.mxu0 %v218
    %1608 = vmatpush1.bf16.msra.mxu0 %v217
    %1609 = vmatprep.subr.bf16.mxu0 %v222
    %1610 = vmatpush1.bf16.msra.mxu0 %v221
    %1611 = vmatprep.subr.bf16.mxu0 %v226
    %1612 = vmatpush1.bf16.msra.mxu0 %v225
    %1613 = vmatprep.subr.bf16.mxu0 %v230
    %1614 = vmatpush1.bf16.msra.mxu0 %v229
    %1615 = vmatprep.subr.bf16.mxu0 %v234
    %1616 = vmatpush1.bf16.msra.mxu0 %v233
    %1617 = vmatprep.subr.bf16.mxu0 %v238
    %1618 = vmatpush1.bf16.msra.mxu0 %v237
    %1619 = vmatprep.subr.bf16.mxu0 0
    %1620 = vmatpush1.bf16.msra.mxu0 0
    %1621 = vmatprep.subr.bf16.mxu0 0
    %1622 = vmatpush1.bf16.msra.mxu0 0
    %1623 = vmatprep.subr.bf16.mxu0 0
    %1624 = vmatpush1.bf16.msra.mxu0 0
    %1625 = vmatprep.subr.bf16.mxu0 0
    %1626 = vmatpush1.bf16.msra.mxu0 0
    %1627 = vmatprep.subr.bf16.mxu0 0
    %1628 = vmatpush1.bf16.msra.mxu0 0
    %1629 = vmatprep.subr.bf16.mxu0 0
    %1630 = vmatpush1.bf16.msra.mxu0 0
    %1631 = vmatprep.subr.bf16.mxu0 0
    %1632 = vmatpush1.bf16.msra.mxu0 0
    %1633 = vmatprep.subr.bf16.mxu0 0
    %1634 = vmatpush1.bf16.msra.mxu0 0
    %1635 = vmatprep.mubr.bf16.mxu0 0
    %1636 = vmatmul.mubr.bf16.gmra.mrb[0].mxu0 %v1561
    %v1637 = vpop.f32.mrb[0].mxu0
    %v1638 = vadd.f32 0.0, %v1637
    %v1639 = vpop.f32.mrb[0].mxu0
    %v1640 = vadd.f32 0.0, %v1639
    %v1641 = vpop.f32.mrb[0].mxu0
    %v1642 = vpop.f32.mrb[0].mxu0
    %1643 = vdwg.mxu0
    %v1645 = vsel %vm393, %v1558, 0
    %1647 = vmatprep.subr.bf16.mxu0 %v378
    %1648 = vmatpush1.bf16.msra.mxu0 %v377
    %1649 = vmatprep.subr.bf16.mxu0 %v382
    %1650 = vmatpush1.bf16.msra.mxu0 %v381
    %1651 = vmatprep.subr.bf16.mxu0 0
    %1652 = vmatpush1.bf16.msra.mxu0 0
    %1653 = vmatprep.subr.bf16.mxu0 0
    %1654 = vmatpush1.bf16.msra.mxu0 0
    %1655 = vmatprep.subr.bf16.mxu0 0
    %1656 = vmatpush1.bf16.msra.mxu0 0
    %1657 = vmatprep.subr.bf16.mxu0 0
    %1658 = vmatpush1.bf16.msra.mxu0 0
    %1659 = vmatprep.subr.bf16.mxu0 0
    %1660 = vmatpush1.bf16.msra.mxu0 0
    %1661 = vmatprep.subr.bf16.mxu0 0
    %1662 = vmatpush1.bf16.msra.mxu0 0
    %1663 = vmatprep.subr.bf16.mxu0 0
    %1664 = vmatpush1.bf16.msra.mxu0 0
    %1665 = vmatprep.subr.bf16.mxu0 0
    %1666 = vmatpush1.bf16.msra.mxu0 0
    %1667 = vmatprep.subr.bf16.mxu0 0
    %1668 = vmatpush1.bf16.msra.mxu0 0
    %1669 = vmatprep.subr.bf16.mxu0 0
    %1670 = vmatpush1.bf16.msra.mxu0 0
    %1671 = vmatprep.subr.bf16.mxu0 0
    %1672 = vmatpush1.bf16.msra.mxu0 0
    %1673 = vmatprep.subr.bf16.mxu0 0
    %1674 = vmatpush1.bf16.msra.mxu0 0
    %1675 = vmatprep.subr.bf16.mxu0 0
    %1676 = vmatpush1.bf16.msra.mxu0 0
    %1677 = vmatprep.subr.bf16.mxu0 0
    %1678 = vmatpush1.bf16.msra.mxu0 0
    %1679 = vmatprep.mubr.bf16.mxu0 0
    %1680 = vmatmul.mubr.bf16.gmra.mrb[0].mxu0 %v1645
    %v1681 = vpop.f32.mrb[0].mxu0
    %v1682 = vadd.f32 %v1597, %v1681
    %v1683 = vpop.f32.mrb[0].mxu0
    %v1684 = vadd.f32 %v1599, %v1683
    %v1685 = vpop.f32.mrb[0].mxu0
    %v1686 = vpop.f32.mrb[0].mxu0
    %1687 = vdwg.mxu0
    %1688 = vmatprep.subr.bf16.mxu0 %v380
    %1689 = vmatpush1.bf16.msra.mxu0 %v379
    %1690 = vmatprep.subr.bf16.mxu0 %v384
    %1691 = vmatpush1.bf16.msra.mxu0 %v383
    %1692 = vmatprep.subr.bf16.mxu0 0
    %1693 = vmatpush1.bf16.msra.mxu0 0
    %1694 = vmatprep.subr.bf16.mxu0 0
    %1695 = vmatpush1.bf16.msra.mxu0 0
    %1696 = vmatprep.subr.bf16.mxu0 0
    %1697 = vmatpush1.bf16.msra.mxu0 0
    %1698 = vmatprep.subr.bf16.mxu0 0
    %1699 = vmatpush1.bf16.msra.mxu0 0
    %1700 = vmatprep.subr.bf16.mxu0 0
    %1701 = vmatpush1.bf16.msra.mxu0 0
    %1702 = vmatprep.subr.bf16.mxu0 0
    %1703 = vmatpush1.bf16.msra.mxu0 0
    %1704 = vmatprep.subr.bf16.mxu0 0
    %1705 = vmatpush1.bf16.msra.mxu0 0
    %1706 = vmatprep.subr.bf16.mxu0 0
    %1707 = vmatpush1.bf16.msra.mxu0 0
    %1708 = vmatprep.subr.bf16.mxu0 0
    %1709 = vmatpush1.bf16.msra.mxu0 0
    %1710 = vmatprep.subr.bf16.mxu0 0
    %1711 = vmatpush1.bf16.msra.mxu0 0
    %1712 = vmatprep.subr.bf16.mxu0 0
    %1713 = vmatpush1.bf16.msra.mxu0 0
    %1714 = vmatprep.subr.bf16.mxu0 0
    %1715 = vmatpush1.bf16.msra.mxu0 0
    %1716 = vmatprep.subr.bf16.mxu0 0
    %1717 = vmatpush1.bf16.msra.mxu0 0
    %1718 = vmatprep.subr.bf16.mxu0 0
    %1719 = vmatpush1.bf16.msra.mxu0 0
    %1720 = vmatprep.mubr.bf16.mxu0 0
    %1721 = vmatmul.mubr.bf16.gmra.mrb[0].mxu0 %v1645
    %v1722 = vpop.f32.mrb[0].mxu0
    %v1723 = vadd.f32 %v1638, %v1722
    %v1724 = vpop.f32.mrb[0].mxu0
    %v1725 = vadd.f32 %v1640, %v1724
    %v1726 = vpop.f32.mrb[0].mxu0
    %v1727 = vpop.f32.mrb[0].mxu0
    %1728 = vdwg.mxu0
    %v1729 = vadd.f32 %v1682, %v483
    %v1730 = vadd.f32 %v1684, %v487
    %v1731 = vadd.f32 %v1723, %v491
    %v1732 = vadd.f32 %v1725, %v495
    %v1733 = vxor.u32 %v1729, 2147483648
    %v1734 = vmul.f32 %v1733, 1.442695
    %v1735 = vpow.pop %v1734
    %v1736 = vadd.f32 %v1735, 1.0
    %v1737 = vrcp.pop %v1736
    %v1738 = vmul.f32 1.0, %v1737
    %v1739 = vxor.u32 %v1730, 2147483648
    %v1740 = vmul.f32 %v1739, 1.442695
    %v1741 = vpow.pop %v1740
    %v1742 = vadd.f32 %v1741, 1.0
    %v1743 = vrcp.pop %v1742
    %v1744 = vmul.f32 1.0, %v1743
    %v1745 = vtanh.pop %v1731
    %v1746 = vxor.u32 %v1732, 2147483648
    %v1747 = vmul.f32 %v1746, 1.442695
    %v1748 = vpow.pop %v1747
    %v1749 = vadd.f32 %v1748, 1.0
    %v1750 = vrcp.pop %v1749
    %v1751 = vmul.f32 1.0, %v1750
    %v1752 = vmul.f32 %v1744, %v1560
    %v1753 = vmul.f32 %v1738, %v1745
    %v1754 = vadd.f32 %v1752, %v1753
    %v1755 = vtanh.pop %v1754
    %v1756 = vmul.f32 %v1751, %v1755
    %1757 = vst [vmem:[#allocation3] sm:$0xff] %v1754
    %1758 = vst [vmem:[#allocation2] sm:$0xff] %v1756
    %v1759 = vpack.c.bf16 %v1756, %v1756
    %s1760 = scalar_lea.vmem [#allocation10], 24
    %1761 = vst [vmem:[%s1760] sm:$0xf] %v1759
    %s1762 = scalar_lea.vmem [#allocation4], 28
    %v1763 = vld [vmem:[%s1762] sm:$0xf]
    %v1764 = vld [vmem:[#allocation2] sm:$0xff]
    %v1765 = vld [vmem:[#allocation3] sm:$0xff]
    %v1766 = vpack.c.bf16 %v1764, %v1764
    %1767 = vmatprep.subr.bf16.mxu0 %v208
    %1768 = vmatpush1.bf16.msra.mxu0 %v207
    %1769 = vmatprep.subr.bf16.mxu0 %v212
    %1770 = vmatpush1.bf16.msra.mxu0 %v211
    %1771 = vmatprep.subr.bf16.mxu0 %v216
    %1772 = vmatpush1.bf16.msra.mxu0 %v215
    %1773 = vmatprep.subr.bf16.mxu0 %v220
    %1774 = vmatpush1.bf16.msra.mxu0 %v219
    %1775 = vmatprep.subr.bf16.mxu0 %v224
    %1776 = vmatpush1.bf16.msra.mxu0 %v223
    %1777 = vmatprep.subr.bf16.mxu0 %v228
    %1778 = vmatpush1.bf16.msra.mxu0 %v227
    %1779 = vmatprep.subr.bf16.mxu0 %v232
    %1780 = vmatpush1.bf16.msra.mxu0 %v231
    %1781 = vmatprep.subr.bf16.mxu0 %v236
    %1782 = vmatpush1.bf16.msra.mxu0 %v235
    %1783 = vmatprep.subr.bf16.mxu0 0
    %1784 = vmatpush1.bf16.msra.mxu0 0
    %1785 = vmatprep.subr.bf16.mxu0 0
    %1786 = vmatpush1.bf16.msra.mxu0 0
    %1787 = vmatprep.subr.bf16.mxu0 0
    %1788 = vmatpush1.bf16.msra.mxu0 0
    %1789 = vmatprep.subr.bf16.mxu0 0
    %1790 = vmatpush1.bf16.msra.mxu0 0
    %1791 = vmatprep.subr.bf16.mxu0 0
    %1792 = vmatpush1.bf16.msra.mxu0 0
    %1793 = vmatprep.subr.bf16.mxu0 0
    %1794 = vmatpush1.bf16.msra.mxu0 0
    %1795 = vmatprep.subr.bf16.mxu0 0
    %1796 = vmatpush1.bf16.msra.mxu0 0
    %1797 = vmatprep.subr.bf16.mxu0 0
    %1798 = vmatpush1.bf16.msra.mxu0 0
    %1799 = vmatprep.mubr.bf16.mxu0 0
    %1800 = vmatmul.mubr.bf16.gmra.mrb[0].mxu0 %v1766
    %v1801 = vpop.f32.mrb[0].mxu0
    %v1802 = vadd.f32 0.0, %v1801
    %v1803 = vpop.f32.mrb[0].mxu0
    %v1804 = vadd.f32 0.0, %v1803
    %v1805 = vpop.f32.mrb[0].mxu0
    %v1806 = vpop.f32.mrb[0].mxu0
    %1807 = vdwg.mxu0
    %1808 = vmatprep.subr.bf16.mxu0 %v210
    %1809 = vmatpush1.bf16.msra.mxu0 %v209
    %1810 = vmatprep.subr.bf16.mxu0 %v214
    %1811 = vmatpush1.bf16.msra.mxu0 %v213
    %1812 = vmatprep.subr.bf16.mxu0 %v218
    %1813 = vmatpush1.bf16.msra.mxu0 %v217
    %1814 = vmatprep.subr.bf16.mxu0 %v222
    %1815 = vmatpush1.bf16.msra.mxu0 %v221
    %1816 = vmatprep.subr.bf16.mxu0 %v226
    %1817 = vmatpush1.bf16.msra.mxu0 %v225
    %1818 = vmatprep.subr.bf16.mxu0 %v230
    %1819 = vmatpush1.bf16.msra.mxu0 %v229
    %1820 = vmatprep.subr.bf16.mxu0 %v234
    %1821 = vmatpush1.bf16.msra.mxu0 %v233
    %1822 = vmatprep.subr.bf16.mxu0 %v238
    %1823 = vmatpush1.bf16.msra.mxu0 %v237
    %1824 = vmatprep.subr.bf16.mxu0 0
    %1825 = vmatpush1.bf16.msra.mxu0 0
    %1826 = vmatprep.subr.bf16.mxu0 0
    %1827 = vmatpush1.bf16.msra.mxu0 0
    %1828 = vmatprep.subr.bf16.mxu0 0
    %1829 = vmatpush1.bf16.msra.mxu0 0
    %1830 = vmatprep.subr.bf16.mxu0 0
    %1831 = vmatpush1.bf16.msra.mxu0 0
    %1832 = vmatprep.subr.bf16.mxu0 0
    %1833 = vmatpush1.bf16.msra.mxu0 0
    %1834 = vmatprep.subr.bf16.mxu0 0
    %1835 = vmatpush1.bf16.msra.mxu0 0
    %1836 = vmatprep.subr.bf16.mxu0 0
    %1837 = vmatpush1.bf16.msra.mxu0 0
    %1838 = vmatprep.subr.bf16.mxu0 0
    %1839 = vmatpush1.bf16.msra.mxu0 0
    %1840 = vmatprep.mubr.bf16.mxu0 0
    %1841 = vmatmul.mubr.bf16.gmra.mrb[0].mxu0 %v1766
    %v1842 = vpop.f32.mrb[0].mxu0
    %v1843 = vadd.f32 0.0, %v1842
    %v1844 = vpop.f32.mrb[0].mxu0
    %v1845 = vadd.f32 0.0, %v1844
    %v1846 = vpop.f32.mrb[0].mxu0
    %v1847 = vpop.f32.mrb[0].mxu0
    %1848 = vdwg.mxu0
    %v1850 = vsel %vm393, %v1763, 0
    %1852 = vmatprep.subr.bf16.mxu0 %v378
    %1853 = vmatpush1.bf16.msra.mxu0 %v377
    %1854 = vmatprep.subr.bf16.mxu0 %v382
    %1855 = vmatpush1.bf16.msra.mxu0 %v381
    %1856 = vmatprep.subr.bf16.mxu0 0
    %1857 = vmatpush1.bf16.msra.mxu0 0
    %1858 = vmatprep.subr.bf16.mxu0 0
    %1859 = vmatpush1.bf16.msra.mxu0 0
    %1860 = vmatprep.subr.bf16.mxu0 0
    %1861 = vmatpush1.bf16.msra.mxu0 0
    %1862 = vmatprep.subr.bf16.mxu0 0
    %1863 = vmatpush1.bf16.msra.mxu0 0
    %1864 = vmatprep.subr.bf16.mxu0 0
    %1865 = vmatpush1.bf16.msra.mxu0 0
    %1866 = vmatprep.subr.bf16.mxu0 0
    %1867 = vmatpush1.bf16.msra.mxu0 0
    %1868 = vmatprep.subr.bf16.mxu0 0
    %1869 = vmatpush1.bf16.msra.mxu0 0
    %1870 = vmatprep.subr.bf16.mxu0 0
    %1871 = vmatpush1.bf16.msra.mxu0 0
    %1872 = vmatprep.subr.bf16.mxu0 0
    %1873 = vmatpush1.bf16.msra.mxu0 0
    %1874 = vmatprep.subr.bf16.mxu0 0
    %1875 = vmatpush1.bf16.msra.mxu0 0
    %1876 = vmatprep.subr.bf16.mxu0 0
    %1877 = vmatpush1.bf16.msra.mxu0 0
    %1878 = vmatprep.subr.bf16.mxu0 0
    %1879 = vmatpush1.bf16.msra.mxu0 0
    %1880 = vmatprep.subr.bf16.mxu0 0
    %1881 = vmatpush1.bf16.msra.mxu0 0
    %1882 = vmatprep.subr.bf16.mxu0 0
    %1883 = vmatpush1.bf16.msra.mxu0 0
    %1884 = vmatprep.mubr.bf16.mxu0 0
    %1885 = vmatmul.mubr.bf16.gmra.mrb[0].mxu0 %v1850
    %v1886 = vpop.f32.mrb[0].mxu0
    %v1887 = vadd.f32 %v1802, %v1886
    %v1888 = vpop.f32.mrb[0].mxu0
    %v1889 = vadd.f32 %v1804, %v1888
    %v1890 = vpop.f32.mrb[0].mxu0
    %v1891 = vpop.f32.mrb[0].mxu0
    %1892 = vdwg.mxu0
    %1893 = vmatprep.subr.bf16.mxu0 %v380
    %1894 = vmatpush1.bf16.msra.mxu0 %v379
    %1895 = vmatprep.subr.bf16.mxu0 %v384
    %1896 = vmatpush1.bf16.msra.mxu0 %v383
    %1897 = vmatprep.subr.bf16.mxu0 0
    %1898 = vmatpush1.bf16.msra.mxu0 0
    %1899 = vmatprep.subr.bf16.mxu0 0
    %1900 = vmatpush1.bf16.msra.mxu0 0
    %1901 = vmatprep.subr.bf16.mxu0 0
    %1902 = vmatpush1.bf16.msra.mxu0 0
    %1903 = vmatprep.subr.bf16.mxu0 0
    %1904 = vmatpush1.bf16.msra.mxu0 0
    %1905 = vmatprep.subr.bf16.mxu0 0
    %1906 = vmatpush1.bf16.msra.mxu0 0
    %1907 = vmatprep.subr.bf16.mxu0 0
    %1908 = vmatpush1.bf16.msra.mxu0 0
    %1909 = vmatprep.subr.bf16.mxu0 0
    %1910 = vmatpush1.bf16.msra.mxu0 0
    %1911 = vmatprep.subr.bf16.mxu0 0
    %1912 = vmatpush1.bf16.msra.mxu0 0
    %1913 = vmatprep.subr.bf16.mxu0 0
    %1914 = vmatpush1.bf16.msra.mxu0 0
    %1915 = vmatprep.subr.bf16.mxu0 0
    %1916 = vmatpush1.bf16.msra.mxu0 0
    %1917 = vmatprep.subr.bf16.mxu0 0
    %1918 = vmatpush1.bf16.msra.mxu0 0
    %1919 = vmatprep.subr.bf16.mxu0 0
    %1920 = vmatpush1.bf16.msra.mxu0 0
    %1921 = vmatprep.subr.bf16.mxu0 0
    %1922 = vmatpush1.bf16.msra.mxu0 0
    %1923 = vmatprep.subr.bf16.mxu0 0
    %1924 = vmatpush1.bf16.msra.mxu0 0
    %1925 = vmatprep.mubr.bf16.mxu0 0
    %1926 = vmatmul.mubr.bf16.gmra.mrb[0].mxu0 %v1850
    %v1927 = vpop.f32.mrb[0].mxu0
    %v1928 = vadd.f32 %v1843, %v1927
    %v1929 = vpop.f32.mrb[0].mxu0
    %v1930 = vadd.f32 %v1845, %v1929
    %v1931 = vpop.f32.mrb[0].mxu0
    %v1932 = vpop.f32.mrb[0].mxu0
    %1933 = vdwg.mxu0
    %v1934 = vadd.f32 %v1887, %v483
    %v1935 = vadd.f32 %v1889, %v487
    %v1936 = vadd.f32 %v1928, %v491
    %v1937 = vadd.f32 %v1930, %v495
    %v1938 = vxor.u32 %v1934, 2147483648
    %v1939 = vmul.f32 %v1938, 1.442695
    %v1940 = vpow.pop %v1939
    %v1941 = vadd.f32 %v1940, 1.0
    %v1942 = vrcp.pop %v1941
    %v1943 = vmul.f32 1.0, %v1942
    %v1944 = vxor.u32 %v1935, 2147483648
    %v1945 = vmul.f32 %v1944, 1.442695
    %v1946 = vpow.pop %v1945
    %v1947 = vadd.f32 %v1946, 1.0
    %v1948 = vrcp.pop %v1947
    %v1949 = vmul.f32 1.0, %v1948
    %v1950 = vtanh.pop %v1936
    %v1951 = vxor.u32 %v1937, 2147483648
    %v1952 = vmul.f32 %v1951, 1.442695
    %v1953 = vpow.pop %v1952
    %v1954 = vadd.f32 %v1953, 1.0
    %v1955 = vrcp.pop %v1954
    %v1956 = vmul.f32 1.0, %v1955
    %v1957 = vmul.f32 %v1949, %v1765
    %v1958 = vmul.f32 %v1943, %v1950
    %v1959 = vadd.f32 %v1957, %v1958
    %v1960 = vtanh.pop %v1959
    %v1961 = vmul.f32 %v1956, %v1960
    %1962 = vst [vmem:[#allocation3] sm:$0xff] %v1959
    %1963 = vst [vmem:[#allocation2] sm:$0xff] %v1961
    %v1964 = vpack.c.bf16 %v1961, %v1961
    %s1965 = scalar_lea.vmem [#allocation10], 28
    %1966 = vst [vmem:[%s1965] sm:$0xf] %v1964
    // Predicated region
    $region34: #{tpu_custom_call.1} parent=1 // pred_check
      _
    $region35: #{tpu_custom_call.1} parent=1 // pred_check_branch
      %1968 = sbr.rel (0) target = $region37
    $region36: #{tpu_custom_call.1} parent=1 // pred_region
      %s1970 = ssub.s32 512, 512
      %1971 = vsyncadd [#allocation6], %s1970
      %s1972 = sshll.u32 [#allocation10], 4
      %s1973 = int_to_ptr.vmem [resolvable:$true] %s1972
      %1978 = dma.vmem_to_hbm [thread:$0]  %s1973, 512, %s4, [#allocation6], 64, 64, 4
    $region37: #{tpu_custom_call.1} parent=1 // pred_fallthru
      _
    // Predicated region
    $region38: #{tpu_custom_call.1} parent=1 // pred_check
      _
    $region39: #{tpu_custom_call.1} parent=1 // pred_check_branch
      %1980 = sbr.rel (0) target = $region41
    $region40: #{tpu_custom_call.1} parent=1 // pred_region
      %1981 = dma.done [#allocation6], 512
    $region41: #{tpu_custom_call.1} parent=1 // pred_fallthru
      _
    %1982 = vsyncpa [#allocation5], 1
    %1983 = vsyncpa [#allocation8], 1
    %1984 = vsyncpa [#allocation6], 1

</llo_original>
